<compile_context>
chip_gen: v5e
topology: v5e:2x2
jax: 0.10.0
libtpu: 0.0.40
codegen_flags: <defaults>
</compile_context>

<pallas_src>
import functools

import jax
import jax.numpy as jnp
from jax.experimental import pallas as pl
from jax.experimental.pallas import tpu as pltpu

EPS = 1e-5
LANE = 128
SUBLANE = 8
MXU_TILE = 256  # batch tile target; matches v6e/v7x MXU height (use 128 on v5e)


def _round_up(n, m):
    return ((n + m - 1) // m) * m


def _mlp_decoder_kernel(
    n_ref,                                   # SMEM scalar prefetch: [true_batch]
    x_ref,
    w1_ref, b1_ref, g1_ref, be1_ref,
    w2_ref, b2_ref, g2_ref, be2_ref,
    w3_ref, b3_ref, g3_ref, be3_ref,
    w4_ref, b4_ref,
    o_ref,
    hbuf, obuf, s1a, s2a, s1b, s2b, s1c, s2c,
    *, tm, matmul_dtype,
):
    p = pl.program_id(0)   # pass / layer index: 0..3 ("arbitrary": stats carry)
    i = pl.program_id(1)   # batch-tile index

    n = n_ref[0]
    inv_n = 1.0 / n.astype(jnp.float32)

    # Row-validity mask: padded batch rows must not contribute to BN stats
    # (after the matmul they hold relu(bias) != 0).
    row = jax.lax.broadcasted_iota(jnp.int32, (tm, 1), 0) + i * tm
    rmask = (row < n).astype(jnp.float32)                      # (tm, 1)

    tile = pl.ds(pl.multiple_of(i * tm, tm), tm)

    def mm(a, w_ref):
        # Weights pre-cast to matmul_dtype in prepare_params; activations cast
        # here (no-op for f32). Accumulation is always f32 on the MXU.
        return jnp.dot(a.astype(matmul_dtype), w_ref[...],
                       preferred_element_type=jnp.float32)

    def relu_stats(h, s1_ref, s2_ref):
        # ReLU, then accumulate masked one-pass stats into (1, F) scratch.
        h = jnp.maximum(h, 0.0)

        @pl.when(i == 0)
        def _():
            s1_ref[...] = jnp.zeros_like(s1_ref)
            s2_ref[...] = jnp.zeros_like(s2_ref)

        hm = h * rmask
        s1_ref[...] += jnp.sum(hm, axis=0, keepdims=True)
        s2_ref[...] += jnp.sum(hm * hm, axis=0, keepdims=True)
        return h

    def bn(h, g_ref, be_ref, s1_ref, s2_ref):
        # Global stats were completed in the previous pass. Padded feature
        # columns have gamma == 0 -> scale == shift == 0, so they stay zero.
        mean = s1_ref[...] * inv_n
        var = jnp.maximum(s2_ref[...] * inv_n - mean * mean, 0.0)  # clamp
        scale = g_ref[...] * jax.lax.rsqrt(var + EPS)
        shift = be_ref[...] - mean * scale
        return h * scale + shift

    @pl.when(p == 0)
    def _():
        h1 = relu_stats(mm(x_ref[...], w1_ref) + b1_ref[...], s1a, s2a)
        hbuf[tile, :] = h1

    @pl.when(p == 1)
    def _():
        h1 = bn(hbuf[tile, :], g1_ref, be1_ref, s1a, s2a)
        h2 = relu_stats(mm(h1, w2_ref) + b2_ref[...], s1b, s2b)
        hbuf[tile, :] = h2

    @pl.when(p == 2)
    def _():
        h2 = bn(hbuf[tile, :], g2_ref, be2_ref, s1b, s2b)
        h3 = relu_stats(mm(h2, w3_ref) + b3_ref[...], s1c, s2c)
        obuf[tile, :] = h3

    @pl.when(p == 3)
    def _():
        h3 = bn(obuf[tile, :], g3_ref, be3_ref, s1c, s2c)
        o_ref[...] = (mm(h3, w4_ref) + b4_ref[...]).astype(o_ref.dtype)


def prepare_params(params, *, matmul_dtype=jnp.float32):
    """One-time conversion of PyTorch-layout params to kernel layout.

    - Linear weights (out, in) -> transposed (in, out), zero-padded so BOTH
      feature axes (including in_dim) are multiples of 128, cast to matmul_dtype
      (use jnp.bfloat16 for scaled runs on v6e/v7x; keep f32 for exactness).
    - Bias / gamma / beta -> zero-padded, reshaped to (1, F_padded), f32.
    Call at init / weight-load time, NOT per forward call.
    """
    hidden_dim, in_dim = params["w1"].shape
    out_dim = params["w3"].shape[0]
    binary = params["w4"].shape[0]

    in_p = _round_up(in_dim, LANE)
    h_p = _round_up(hidden_dim, LANE)
    o_p = _round_up(out_dim, LANE)
    bin_p = _round_up(binary, LANE)

    def pad_w(w_t, rows, cols):  # w_t is (in, out)
        return jnp.pad(
            w_t, ((0, rows - w_t.shape[0]), (0, cols - w_t.shape[1]))
        ).astype(matmul_dtype)

    def pad_v(v, cols):
        return jnp.pad(v, (0, cols - v.shape[0]))[None, :].astype(jnp.float32)

    args = (
        pad_w(params["w1"].T, in_p, h_p), pad_v(params["b1"], h_p),
        pad_v(params["g1"], h_p), pad_v(params["be1"], h_p),
        pad_w(params["w2"].T, h_p, h_p), pad_v(params["b2"], h_p),
        pad_v(params["g2"], h_p), pad_v(params["be2"], h_p),
        pad_w(params["w3"].T, h_p, o_p), pad_v(params["b3"], o_p),
        pad_v(params["g3"], o_p), pad_v(params["be3"], o_p),
        pad_w(params["w4"].T, o_p, bin_p), pad_v(params["b4"], bin_p),
    )
    dims = dict(in_dim=in_dim, hidden_dim=hidden_dim, out_dim=out_dim,
                binary=binary, in_p=in_p, hidden_p=h_p, out_p=o_p,
                binary_p=bin_p)
    return dict(args=args, dims=dims, matmul_dtype=matmul_dtype)


def mlp_decoder(x, kparams):
    """x: (batch, in_dim) f32. kparams: output of prepare_params()."""
    batch = x.shape[0]
    args = kparams["args"]
    dims = kparams["dims"]
    matmul_dtype = kparams["matmul_dtype"]
    in_p, h_p, o_p, bin_p = (dims["in_p"], dims["hidden_p"],
                             dims["out_p"], dims["binary_p"])
    binary = dims["binary"]

    # Batch tiling: MXU-height tiles, sublane aligned; small batches -> 1 tile.
    tm = min(MXU_TILE, _round_up(batch, SUBLANE))
    b_pad = _round_up(batch, tm)
    nbt = b_pad // tm

    # One cheap pad per call: rows to b_pad (sublane) and cols to in_p (lane).
    x_p = jnp.pad(x.astype(jnp.float32),
                  ((0, b_pad - batch), (0, in_p - x.shape[1])))
    n_arr = jnp.array([batch], jnp.int32)   # true batch, SMEM scalar

    vmem_spec = pl.BlockSpec(memory_space=pltpu.MemorySpace.VMEM)
    grid_spec = pltpu.PrefetchScalarGridSpec(
        num_scalar_prefetch=1,
        grid=(4, nbt),
        in_specs=[
            # x is only consumed in pass 0; pin its block afterwards.
            pl.BlockSpec((tm, in_p),
                         lambda p, i, nb: (jnp.where(p == 0, i, 0), 0)),
        ] + [vmem_spec] * len(args),          # weights stay VMEM-resident
        out_specs=pl.BlockSpec((tm, bin_p),
                               lambda p, i, nb: (jnp.where(p == 3, i, 0), 0)),
        scratch_shapes=[
            pltpu.VMEM((b_pad, h_p), jnp.float32),   # hbuf (h1 then h2)
            pltpu.VMEM((b_pad, o_p), jnp.float32),   # obuf (h3)
            pltpu.VMEM((1, h_p), jnp.float32),       # s1 layer1
            pltpu.VMEM((1, h_p), jnp.float32),       # s2 layer1
            pltpu.VMEM((1, h_p), jnp.float32),       # s1 layer2
            pltpu.VMEM((1, h_p), jnp.float32),       # s2 layer2
            pltpu.VMEM((1, o_p), jnp.float32),       # s1 layer3
            pltpu.VMEM((1, o_p), jnp.float32),       # s2 layer3
        ],
    )

    weight_bytes = sum(a.size * a.dtype.itemsize for a in args)
    needed_vmem = (
        weight_bytes
        + 2 * tm * in_p * 4          # double-buffered x tile
        + 2 * tm * bin_p * 4         # double-buffered out tile
        + b_pad * (h_p + o_p) * 4    # activation scratch
        + (4 * h_p + 2 * o_p) * 4 * SUBLANE
    )
    vmem_limit = int(min(max(needed_vmem * 2, 32 << 20), 96 << 20))

    flops = 2 * b_pad * (in_p * h_p + h_p * h_p + h_p * o_p + o_p * bin_p)
    transcendentals = nbt * (2 * h_p + o_p)
    bytes_accessed = int(x_p.size * 4 + weight_bytes + b_pad * bin_p * 4)

    out_padded = pl.pallas_call(
        functools.partial(_mlp_decoder_kernel, tm=tm, matmul_dtype=matmul_dtype),
        grid_spec=grid_spec,
        out_shape=jax.ShapeDtypeStruct((b_pad, bin_p), jnp.float32),
        compiler_params=pltpu.CompilerParams(
            dimension_semantics=("arbitrary", "arbitrary"),
            vmem_limit_bytes=vmem_limit,
        ),
        cost_estimate=pl.CostEstimate(
            flops=flops,
            transcendentals=transcendentals,
            bytes_accessed=bytes_accessed,
        ),
    )(n_arr, x_p, *args)

    # Lane-/sublane-aligned slice dropping padded rows & output columns.
    return out_padded[:batch, :binary]


def init_params(key, in_dim, hidden_dim, out_dim, binary=1):
    """Deterministic synthetic init mirroring the PyTorch module's shapes."""
    ks = jax.random.split(key, 8)

    def linear(kw, kb, fan_in, fan_out):
        bound = 1.0 / jnp.sqrt(fan_in)
        w = jax.random.uniform(kw, (fan_out, fan_in), jnp.float32, -bound, bound)
        b = jax.random.uniform(kb, (fan_out,), jnp.float32, -bound, bound)
        return w, b

    w1, b1 = linear(ks[0], ks[1], in_dim, hidden_dim)
    w2, b2 = linear(ks[2], ks[3], hidden_dim, hidden_dim)
    w3, b3 = linear(ks[4], ks[5], hidden_dim, out_dim)
    w4, b4 = linear(ks[6], ks[7], out_dim, binary)

    return dict(
        w1=w1, b1=b1,
        g1=jnp.ones((hidden_dim,), jnp.float32), be1=jnp.zeros((hidden_dim,), jnp.float32),
        w2=w2, b2=b2,
        g2=jnp.ones((hidden_dim,), jnp.float32), be2=jnp.zeros((hidden_dim,), jnp.float32),
        w3=w3, b3=b3,
        g3=jnp.ones((out_dim,), jnp.float32), be3=jnp.zeros((out_dim,), jnp.float32),
        w4=w4, b4=b4,
    )


def mlp_decoder_ref(x, params):
    """Pure-JAX reference of the PyTorch forward (training-mode BN)."""
    def bn(h, g, b):
        m = jnp.mean(h, axis=0, keepdims=True)
        v = jnp.mean((h - m) ** 2, axis=0, keepdims=True)
        return g * (h - m) / jnp.sqrt(v + EPS) + b

    h = bn(jax.nn.relu(x @ params["w1"].T + params["b1"]), params["g1"], params["be1"])
    h = bn(jax.nn.relu(h @ params["w2"].T + params["b2"]), params["g2"], params["be2"])
    h = bn(jax.nn.relu(h @ params["w3"].T + params["b3"]), params["g3"], params["be3"])
    return h @ params["w4"].T + params["b4"]


if __name__ == "__main__":
    batch, in_dim, hidden_dim, out_dim, binary = 8, 32, 32, 16, 1

    key = jax.random.PRNGKey(0)
    kx, kp = jax.random.split(key)
    x = jax.random.normal(kx, (batch, in_dim), jnp.float32)
    params = init_params(kp, in_dim, hidden_dim, out_dim, binary)

    # One-time layout prep (transpose / pad / reshape / cast) off the hot path.
    kparams = prepare_params(params, matmul_dtype=jnp.float32)

    out = mlp_decoder(x, kparams)
    out = jax.block_until_ready(out)

    ref = mlp_decoder_ref(x, params)
    assert out.shape == (batch, binary)
    assert jnp.allclose(out, ref, atol=1e-4, rtol=1e-4), (out, ref)

    print("KERNEL_OK")
</pallas_src>

<mosaic_0001>
module attributes {stable_mosaic.version = 11 : i64} {
  func.func @_mlp_decoder_kernel(%arg0: i32, %arg1: i32, %arg2: memref<1xi32, #tpu.memory_space<smem>>, %arg3: memref<8x128xf32, #tpu.memory_space<vmem>>, %arg4: memref<128x128xf32, #tpu.memory_space<vmem>>, %arg5: memref<1x128xf32, #tpu.memory_space<vmem>>, %arg6: memref<1x128xf32, #tpu.memory_space<vmem>>, %arg7: memref<1x128xf32, #tpu.memory_space<vmem>>, %arg8: memref<128x128xf32, #tpu.memory_space<vmem>>, %arg9: memref<1x128xf32, #tpu.memory_space<vmem>>, %arg10: memref<1x128xf32, #tpu.memory_space<vmem>>, %arg11: memref<1x128xf32, #tpu.memory_space<vmem>>, %arg12: memref<128x128xf32, #tpu.memory_space<vmem>>, %arg13: memref<1x128xf32, #tpu.memory_space<vmem>>, %arg14: memref<1x128xf32, #tpu.memory_space<vmem>>, %arg15: memref<1x128xf32, #tpu.memory_space<vmem>>, %arg16: memref<128x128xf32, #tpu.memory_space<vmem>>, %arg17: memref<1x128xf32, #tpu.memory_space<vmem>>, %arg18: memref<8x128xf32, #tpu.memory_space<vmem>>, %arg19: memref<8x128xf32, #tpu.memory_space<vmem>>, %arg20: memref<8x128xf32, #tpu.memory_space<vmem>>, %arg21: memref<1x128xf32, #tpu.memory_space<vmem>>, %arg22: memref<1x128xf32, #tpu.memory_space<vmem>>, %arg23: memref<1x128xf32, #tpu.memory_space<vmem>>, %arg24: memref<1x128xf32, #tpu.memory_space<vmem>>, %arg25: memref<1x128xf32, #tpu.memory_space<vmem>>, %arg26: memref<1x128xf32, #tpu.memory_space<vmem>>) attributes {dimension_semantics = [#tpu.dimension_semantics<arbitrary>, #tpu.dimension_semantics<arbitrary>], iteration_bounds = array<i64: 4, 1>, scalar_prefetch = 1 : i64, scratch_operands = 8 : i64, tpu.core_type = #tpu.core_type<tc>, window_params = [{transform_indices = @transform_0, window_bounds = array<i64: 8, 128>}, {pipeline_mode = #tpu.pipeline_mode<synchronous>, transform_indices = @transform_1, window_bounds = array<i64: 128, 128>}, {pipeline_mode = #tpu.pipeline_mode<synchronous>, transform_indices = @transform_2, window_bounds = array<i64: 1, 128>}, {pipeline_mode = #tpu.pipeline_mode<synchronous>, transform_indices = @transform_3, window_bounds = array<i64: 1, 128>}, {pipeline_mode = #tpu.pipeline_mode<synchronous>, transform_indices = @transform_4, window_bounds = array<i64: 1, 128>}, {pipeline_mode = #tpu.pipeline_mode<synchronous>, transform_indices = @transform_5, window_bounds = array<i64: 128, 128>}, {pipeline_mode = #tpu.pipeline_mode<synchronous>, transform_indices = @transform_6, window_bounds = array<i64: 1, 128>}, {pipeline_mode = #tpu.pipeline_mode<synchronous>, transform_indices = @transform_7, window_bounds = array<i64: 1, 128>}, {pipeline_mode = #tpu.pipeline_mode<synchronous>, transform_indices = @transform_8, window_bounds = array<i64: 1, 128>}, {pipeline_mode = #tpu.pipeline_mode<synchronous>, transform_indices = @transform_9, window_bounds = array<i64: 128, 128>}, {pipeline_mode = #tpu.pipeline_mode<synchronous>, transform_indices = @transform_10, window_bounds = array<i64: 1, 128>}, {pipeline_mode = #tpu.pipeline_mode<synchronous>, transform_indices = @transform_11, window_bounds = array<i64: 1, 128>}, {pipeline_mode = #tpu.pipeline_mode<synchronous>, transform_indices = @transform_12, window_bounds = array<i64: 1, 128>}, {pipeline_mode = #tpu.pipeline_mode<synchronous>, transform_indices = @transform_13, window_bounds = array<i64: 128, 128>}, {pipeline_mode = #tpu.pipeline_mode<synchronous>, transform_indices = @transform_14, window_bounds = array<i64: 1, 128>}, {transform_indices = @transform_15, window_bounds = array<i64: 8, 128>}]} {
    %c0 = arith.constant 0 : index
    %0 = memref.load %arg2[%c0] : memref<1xi32, #tpu.memory_space<smem>>
    %1 = arith.sitofp %0 : i32 to f32
    %cst = arith.constant 1.000000e+00 : f32
    %2 = arith.divf %cst, %1 : f32
    %3 = tpu.iota {dimensions = array<i32: 0>} : vector<8x1xi32>
    %c8_i32 = arith.constant 8 : i32
    %4 = arith.muli %arg1, %c8_i32 : i32
    %5 = vector.broadcast %4 : i32 to vector<8x1xi32>
    %6 = arith.addi %3, %5 : vector<8x1xi32>
    %7 = vector.broadcast %0 : i32 to vector<8x1xi32>
    %8 = arith.cmpi slt, %6, %7 : vector<8x1xi32>
    %9 = arith.extui %8 : vector<8x1xi1> to vector<8x1xi32>
    %10 = arith.sitofp %9 : vector<8x1xi32> to vector<8x1xf32>
    %c8_i32_0 = arith.constant 8 : i32
    %11 = arith.muli %arg1, %c8_i32_0 : i32
    %12 = tpu.assume_multiple %11, 8 : i32
    %c0_i32 = arith.constant 0 : i32
    %13 = arith.cmpi eq, %arg0, %c0_i32 : i32
    %14 = arith.extui %13 : i1 to i32
    %c0_i32_1 = arith.constant 0 : i32
    %15 = arith.cmpi ne, %14, %c0_i32_1 : i32
    scf.if %15 {
      %c0_5 = arith.constant 0 : index
      %c0_6 = arith.constant 0 : index
      %25 = vector.load %arg3[%c0_5, %c0_6] : memref<8x128xf32, #tpu.memory_space<vmem>>, vector<8x128xf32>
      %c0_7 = arith.constant 0 : index
      %c0_8 = arith.constant 0 : index
      %26 = vector.load %arg4[%c0_7, %c0_8] : memref<128x128xf32, #tpu.memory_space<vmem>>, vector<128x128xf32>
      %cst_9 = arith.constant dense<0.000000e+00> : vector<8x128xf32>
      %27 = tpu.matmul %25, %26, %cst_9 {dimension_numbers = #tpu.dot_dimension_numbers<[1], [0], [0], [1], [0, 0, 1, 1], [], []>} : vector<8x128xf32>, vector<128x128xf32>, vector<8x128xf32> -> vector<8x128xf32>
      %c0_10 = arith.constant 0 : index
      %c0_11 = arith.constant 0 : index
      %28 = vector.load %arg5[%c0_10, %c0_11] : memref<1x128xf32, #tpu.memory_space<vmem>>, vector<1x128xf32>
      %29 = vector.broadcast %28 : vector<1x128xf32> to vector<8x128xf32>
      %30 = arith.addf %27, %29 : vector<8x128xf32>
      %cst_12 = arith.constant 0.000000e+00 : f32
      %31 = vector.broadcast %cst_12 : f32 to vector<8x128xf32>
      %32 = arith.maximumf %30, %31 : vector<8x128xf32>
      %c0_i32_13 = arith.constant 0 : i32
      %33 = arith.cmpi eq, %arg1, %c0_i32_13 : i32
      %34 = arith.extui %33 : i1 to i32
      %c0_i32_14 = arith.constant 0 : i32
      %35 = arith.cmpi ne, %34, %c0_i32_14 : i32
      scf.if %35 {
        %cst_26 = arith.constant 0.000000e+00 : f32
        %51 = vector.broadcast %cst_26 : f32 to vector<1x128xf32>
        %c0_27 = arith.constant 0 : index
        %c0_28 = arith.constant 0 : index
        %52 = vector.load %arg21[%c0_27, %c0_28] : memref<1x128xf32, #tpu.memory_space<vmem>>, vector<1x128xf32>
        tpu.vector_store %arg21[%c0_27, %c0_28], %51 {strides = array<i32>} : memref<1x128xf32, #tpu.memory_space<vmem>>, vector<1x128xf32>,
        %cst_29 = arith.constant 0.000000e+00 : f32
        %53 = vector.broadcast %cst_29 : f32 to vector<1x128xf32>
        %c0_30 = arith.constant 0 : index
        %c0_31 = arith.constant 0 : index
        %54 = vector.load %arg22[%c0_30, %c0_31] : memref<1x128xf32, #tpu.memory_space<vmem>>, vector<1x128xf32>
        tpu.vector_store %arg22[%c0_30, %c0_31], %53 {strides = array<i32>} : memref<1x128xf32, #tpu.memory_space<vmem>>, vector<1x128xf32>,
      } else {
      }
      %36 = vector.broadcast %10 : vector<8x1xf32> to vector<8x128xf32>
      %37 = arith.mulf %32, %36 : vector<8x128xf32>
      %c0_15 = arith.constant 0 : index
      %c0_16 = arith.constant 0 : index
      %38 = vector.load %arg21[%c0_15, %c0_16] : memref<1x128xf32, #tpu.memory_space<vmem>>, vector<1x128xf32>
      %cst_17 = arith.constant dense<0.000000e+00> : vector<128xf32>
      %39 = vector.multi_reduction <add>, %37, %cst_17 [0] : vector<8x128xf32> to vector<128xf32>
      %40 = vector.shape_cast %39 : vector<128xf32> to vector<1x128xf32>
      %41 = arith.addf %38, %40 : vector<1x128xf32>
      %c0_18 = arith.constant 0 : index
      %c0_19 = arith.constant 0 : index
      %42 = vector.load %arg21[%c0_18, %c0_19] : memref<1x128xf32, #tpu.memory_space<vmem>>, vector<1x128xf32>
      tpu.vector_store %arg21[%c0_18, %c0_19], %41 {strides = array<i32>} : memref<1x128xf32, #tpu.memory_space<vmem>>, vector<1x128xf32>,
      %c0_20 = arith.constant 0 : index
      %c0_21 = arith.constant 0 : index
      %43 = vector.load %arg22[%c0_20, %c0_21] : memref<1x128xf32, #tpu.memory_space<vmem>>, vector<1x128xf32>
      %44 = arith.mulf %37, %37 : vector<8x128xf32>
      %cst_22 = arith.constant dense<0.000000e+00> : vector<128xf32>
      %45 = vector.multi_reduction <add>, %44, %cst_22 [0] : vector<8x128xf32> to vector<128xf32>
      %46 = vector.shape_cast %45 : vector<128xf32> to vector<1x128xf32>
      %47 = arith.addf %43, %46 : vector<1x128xf32>
      %c0_23 = arith.constant 0 : index
      %c0_24 = arith.constant 0 : index
      %48 = vector.load %arg22[%c0_23, %c0_24] : memref<1x128xf32, #tpu.memory_space<vmem>>, vector<1x128xf32>
      tpu.vector_store %arg22[%c0_23, %c0_24], %47 {strides = array<i32>} : memref<1x128xf32, #tpu.memory_space<vmem>>, vector<1x128xf32>,
      %49 = arith.index_cast %12 : i32 to index
      %c0_25 = arith.constant 0 : index
      %50 = vector.load %arg19[%49, %c0_25] : memref<8x128xf32, #tpu.memory_space<vmem>>, vector<8x128xf32>
      tpu.vector_store %arg19[%49, %c0_25], %32 {strides = array<i32>} : memref<8x128xf32, #tpu.memory_space<vmem>>, vector<8x128xf32>,
    } else {
    }
    %c1_i32 = arith.constant 1 : i32
    %16 = arith.cmpi eq, %arg0, %c1_i32 : i32
    %17 = arith.extui %16 : i1 to i32
    %c0_i32_2 = arith.constant 0 : i32
    %18 = arith.cmpi ne, %17, %c0_i32_2 : i32
    scf.if %18 {
      %25 = arith.index_cast %12 : i32 to index
      %c0_5 = arith.constant 0 : index
      %26 = vector.load %arg19[%25, %c0_5] : memref<8x128xf32, #tpu.memory_space<vmem>>, vector<8x128xf32>
      %c0_6 = arith.constant 0 : index
      %c0_7 = arith.constant 0 : index
      %27 = vector.load %arg21[%c0_6, %c0_7] : memref<1x128xf32, #tpu.memory_space<vmem>>, vector<1x128xf32>
      %28 = vector.broadcast %2 : f32 to vector<1x128xf32>
      %29 = arith.mulf %27, %28 : vector<1x128xf32>
      %c0_8 = arith.constant 0 : index
      %c0_9 = arith.constant 0 : index
      %30 = vector.load %arg22[%c0_8, %c0_9] : memref<1x128xf32, #tpu.memory_space<vmem>>, vector<1x128xf32>
      %31 = vector.broadcast %2 : f32 to vector<1x128xf32>
      %32 = arith.mulf %30, %31 : vector<1x128xf32>
      %33 = arith.mulf %29, %29 : vector<1x128xf32>
      %34 = arith.subf %32, %33 : vector<1x128xf32>
      %cst_10 = arith.constant 0.000000e+00 : f32
      %35 = vector.broadcast %cst_10 : f32 to vector<1x128xf32>
      %36 = arith.maximumf %34, %35 : vector<1x128xf32>
      %c0_11 = arith.constant 0 : index
      %c0_12 = arith.constant 0 : index
      %37 = vector.load %arg6[%c0_11, %c0_12] : memref<1x128xf32, #tpu.memory_space<vmem>>, vector<1x128xf32>
      %cst_13 = arith.constant 9.99999974E-6 : f32
      %38 = vector.broadcast %cst_13 : f32 to vector<1x128xf32>
      %39 = arith.addf %36, %38 : vector<1x128xf32>
      %40 = math.rsqrt %39 : vector<1x128xf32>
      %41 = arith.mulf %37, %40 : vector<1x128xf32>
      %c0_14 = arith.constant 0 : index
      %c0_15 = arith.constant 0 : index
      %42 = vector.load %arg7[%c0_14, %c0_15] : memref<1x128xf32, #tpu.memory_space<vmem>>, vector<1x128xf32>
      %43 = arith.mulf %29, %41 : vector<1x128xf32>
      %44 = arith.subf %42, %43 : vector<1x128xf32>
      %45 = vector.broadcast %41 : vector<1x128xf32> to vector<8x128xf32>
      %46 = arith.mulf %26, %45 : vector<8x128xf32>
      %47 = vector.broadcast %44 : vector<1x128xf32> to vector<8x128xf32>
      %48 = arith.addf %46, %47 : vector<8x128xf32>
      %c0_16 = arith.constant 0 : index
      %c0_17 = arith.constant 0 : index
      %49 = vector.load %arg8[%c0_16, %c0_17] : memref<128x128xf32, #tpu.memory_space<vmem>>, vector<128x128xf32>
      %cst_18 = arith.constant dense<0.000000e+00> : vector<8x128xf32>
      %50 = tpu.matmul %48, %49, %cst_18 {dimension_numbers = #tpu.dot_dimension_numbers<[1], [0], [0], [1], [0, 0, 1, 1], [], []>} : vector<8x128xf32>, vector<128x128xf32>, vector<8x128xf32> -> vector<8x128xf32>
      %c0_19 = arith.constant 0 : index
      %c0_20 = arith.constant 0 : index
      %51 = vector.load %arg9[%c0_19, %c0_20] : memref<1x128xf32, #tpu.memory_space<vmem>>, vector<1x128xf32>
      %52 = vector.broadcast %51 : vector<1x128xf32> to vector<8x128xf32>
      %53 = arith.addf %50, %52 : vector<8x128xf32>
      %cst_21 = arith.constant 0.000000e+00 : f32
      %54 = vector.broadcast %cst_21 : f32 to vector<8x128xf32>
      %55 = arith.maximumf %53, %54 : vector<8x128xf32>
      %c0_i32_22 = arith.constant 0 : i32
      %56 = arith.cmpi eq, %arg1, %c0_i32_22 : i32
      %57 = arith.extui %56 : i1 to i32
      %c0_i32_23 = arith.constant 0 : i32
      %58 = arith.cmpi ne, %57, %c0_i32_23 : i32
      scf.if %58 {
        %cst_35 = arith.constant 0.000000e+00 : f32
        %74 = vector.broadcast %cst_35 : f32 to vector<1x128xf32>
        %c0_36 = arith.constant 0 : index
        %c0_37 = arith.constant 0 : index
        %75 = vector.load %arg23[%c0_36, %c0_37] : memref<1x128xf32, #tpu.memory_space<vmem>>, vector<1x128xf32>
        tpu.vector_store %arg23[%c0_36, %c0_37], %74 {strides = array<i32>} : memref<1x128xf32, #tpu.memory_space<vmem>>, vector<1x128xf32>,
        %cst_38 = arith.constant 0.000000e+00 : f32
        %76 = vector.broadcast %cst_38 : f32 to vector<1x128xf32>
        %c0_39 = arith.constant 0 : index
        %c0_40 = arith.constant 0 : index
        %77 = vector.load %arg24[%c0_39, %c0_40] : memref<1x128xf32, #tpu.memory_space<vmem>>, vector<1x128xf32>
        tpu.vector_store %arg24[%c0_39, %c0_40], %76 {strides = array<i32>} : memref<1x128xf32, #tpu.memory_space<vmem>>, vector<1x128xf32>,
      } else {
      }
      %59 = vector.broadcast %10 : vector<8x1xf32> to vector<8x128xf32>
      %60 = arith.mulf %55, %59 : vector<8x128xf32>
      %c0_24 = arith.constant 0 : index
      %c0_25 = arith.constant 0 : index
      %61 = vector.load %arg23[%c0_24, %c0_25] : memref<1x128xf32, #tpu.memory_space<vmem>>, vector<1x128xf32>
      %cst_26 = arith.constant dense<0.000000e+00> : vector<128xf32>
      %62 = vector.multi_reduction <add>, %60, %cst_26 [0] : vector<8x128xf32> to vector<128xf32>
      %63 = vector.shape_cast %62 : vector<128xf32> to vector<1x128xf32>
      %64 = arith.addf %61, %63 : vector<1x128xf32>
      %c0_27 = arith.constant 0 : index
      %c0_28 = arith.constant 0 : index
      %65 = vector.load %arg23[%c0_27, %c0_28] : memref<1x128xf32, #tpu.memory_space<vmem>>, vector<1x128xf32>
      tpu.vector_store %arg23[%c0_27, %c0_28], %64 {strides = array<i32>} : memref<1x128xf32, #tpu.memory_space<vmem>>, vector<1x128xf32>,
      %c0_29 = arith.constant 0 : index
      %c0_30 = arith.constant 0 : index
      %66 = vector.load %arg24[%c0_29, %c0_30] : memref<1x128xf32, #tpu.memory_space<vmem>>, vector<1x128xf32>
      %67 = arith.mulf %60, %60 : vector<8x128xf32>
      %cst_31 = arith.constant dense<0.000000e+00> : vector<128xf32>
      %68 = vector.multi_reduction <add>, %67, %cst_31 [0] : vector<8x128xf32> to vector<128xf32>
      %69 = vector.shape_cast %68 : vector<128xf32> to vector<1x128xf32>
      %70 = arith.addf %66, %69 : vector<1x128xf32>
      %c0_32 = arith.constant 0 : index
      %c0_33 = arith.constant 0 : index
      %71 = vector.load %arg24[%c0_32, %c0_33] : memref<1x128xf32, #tpu.memory_space<vmem>>, vector<1x128xf32>
      tpu.vector_store %arg24[%c0_32, %c0_33], %70 {strides = array<i32>} : memref<1x128xf32, #tpu.memory_space<vmem>>, vector<1x128xf32>,
      %72 = arith.index_cast %12 : i32 to index
      %c0_34 = arith.constant 0 : index
      %73 = vector.load %arg19[%72, %c0_34] : memref<8x128xf32, #tpu.memory_space<vmem>>, vector<8x128xf32>
      tpu.vector_store %arg19[%72, %c0_34], %55 {strides = array<i32>} : memref<8x128xf32, #tpu.memory_space<vmem>>, vector<8x128xf32>,
    } else {
    }
    %c2_i32 = arith.constant 2 : i32
    %19 = arith.cmpi eq, %arg0, %c2_i32 : i32
    %20 = arith.extui %19 : i1 to i32
    %c0_i32_3 = arith.constant 0 : i32
    %21 = arith.cmpi ne, %20, %c0_i32_3 : i32
    scf.if %21 {
      %25 = arith.index_cast %12 : i32 to index
      %c0_5 = arith.constant 0 : index
      %26 = vector.load %arg19[%25, %c0_5] : memref<8x128xf32, #tpu.memory_space<vmem>>, vector<8x128xf32>
      %c0_6 = arith.constant 0 : index
      %c0_7 = arith.constant 0 : index
      %27 = vector.load %arg23[%c0_6, %c0_7] : memref<1x128xf32, #tpu.memory_space<vmem>>, vector<1x128xf32>
      %28 = vector.broadcast %2 : f32 to vector<1x128xf32>
      %29 = arith.mulf %27, %28 : vector<1x128xf32>
      %c0_8 = arith.constant 0 : index
      %c0_9 = arith.constant 0 : index
      %30 = vector.load %arg24[%c0_8, %c0_9] : memref<1x128xf32, #tpu.memory_space<vmem>>, vector<1x128xf32>
      %31 = vector.broadcast %2 : f32 to vector<1x128xf32>
      %32 = arith.mulf %30, %31 : vector<1x128xf32>
      %33 = arith.mulf %29, %29 : vector<1x128xf32>
      %34 = arith.subf %32, %33 : vector<1x128xf32>
      %cst_10 = arith.constant 0.000000e+00 : f32
      %35 = vector.broadcast %cst_10 : f32 to vector<1x128xf32>
      %36 = arith.maximumf %34, %35 : vector<1x128xf32>
      %c0_11 = arith.constant 0 : index
      %c0_12 = arith.constant 0 : index
      %37 = vector.load %arg10[%c0_11, %c0_12] : memref<1x128xf32, #tpu.memory_space<vmem>>, vector<1x128xf32>
      %cst_13 = arith.constant 9.99999974E-6 : f32
      %38 = vector.broadcast %cst_13 : f32 to vector<1x128xf32>
      %39 = arith.addf %36, %38 : vector<1x128xf32>
      %40 = math.rsqrt %39 : vector<1x128xf32>
      %41 = arith.mulf %37, %40 : vector<1x128xf32>
      %c0_14 = arith.constant 0 : index
      %c0_15 = arith.constant 0 : index
      %42 = vector.load %arg11[%c0_14, %c0_15] : memref<1x128xf32, #tpu.memory_space<vmem>>, vector<1x128xf32>
      %43 = arith.mulf %29, %41 : vector<1x128xf32>
      %44 = arith.subf %42, %43 : vector<1x128xf32>
      %45 = vector.broadcast %41 : vector<1x128xf32> to vector<8x128xf32>
      %46 = arith.mulf %26, %45 : vector<8x128xf32>
      %47 = vector.broadcast %44 : vector<1x128xf32> to vector<8x128xf32>
      %48 = arith.addf %46, %47 : vector<8x128xf32>
      %c0_16 = arith.constant 0 : index
      %c0_17 = arith.constant 0 : index
      %49 = vector.load %arg12[%c0_16, %c0_17] : memref<128x128xf32, #tpu.memory_space<vmem>>, vector<128x128xf32>
      %cst_18 = arith.constant dense<0.000000e+00> : vector<8x128xf32>
      %50 = tpu.matmul %48, %49, %cst_18 {dimension_numbers = #tpu.dot_dimension_numbers<[1], [0], [0], [1], [0, 0, 1, 1], [], []>} : vector<8x128xf32>, vector<128x128xf32>, vector<8x128xf32> -> vector<8x128xf32>
      %c0_19 = arith.constant 0 : index
      %c0_20 = arith.constant 0 : index
      %51 = vector.load %arg13[%c0_19, %c0_20] : memref<1x128xf32, #tpu.memory_space<vmem>>, vector<1x128xf32>
      %52 = vector.broadcast %51 : vector<1x128xf32> to vector<8x128xf32>
      %53 = arith.addf %50, %52 : vector<8x128xf32>
      %cst_21 = arith.constant 0.000000e+00 : f32
      %54 = vector.broadcast %cst_21 : f32 to vector<8x128xf32>
      %55 = arith.maximumf %53, %54 : vector<8x128xf32>
      %c0_i32_22 = arith.constant 0 : i32
      %56 = arith.cmpi eq, %arg1, %c0_i32_22 : i32
      %57 = arith.extui %56 : i1 to i32
      %c0_i32_23 = arith.constant 0 : i32
      %58 = arith.cmpi ne, %57, %c0_i32_23 : i32
      scf.if %58 {
        %cst_35 = arith.constant 0.000000e+00 : f32
        %74 = vector.broadcast %cst_35 : f32 to vector<1x128xf32>
        %c0_36 = arith.constant 0 : index
        %c0_37 = arith.constant 0 : index
        %75 = vector.load %arg25[%c0_36, %c0_37] : memref<1x128xf32, #tpu.memory_space<vmem>>, vector<1x128xf32>
        tpu.vector_store %arg25[%c0_36, %c0_37], %74 {strides = array<i32>} : memref<1x128xf32, #tpu.memory_space<vmem>>, vector<1x128xf32>,
        %cst_38 = arith.constant 0.000000e+00 : f32
        %76 = vector.broadcast %cst_38 : f32 to vector<1x128xf32>
        %c0_39 = arith.constant 0 : index
        %c0_40 = arith.constant 0 : index
        %77 = vector.load %arg26[%c0_39, %c0_40] : memref<1x128xf32, #tpu.memory_space<vmem>>, vector<1x128xf32>
        tpu.vector_store %arg26[%c0_39, %c0_40], %76 {strides = array<i32>} : memref<1x128xf32, #tpu.memory_space<vmem>>, vector<1x128xf32>,
      } else {
      }
      %59 = vector.broadcast %10 : vector<8x1xf32> to vector<8x128xf32>
      %60 = arith.mulf %55, %59 : vector<8x128xf32>
      %c0_24 = arith.constant 0 : index
      %c0_25 = arith.constant 0 : index
      %61 = vector.load %arg25[%c0_24, %c0_25] : memref<1x128xf32, #tpu.memory_space<vmem>>, vector<1x128xf32>
      %cst_26 = arith.constant dense<0.000000e+00> : vector<128xf32>
      %62 = vector.multi_reduction <add>, %60, %cst_26 [0] : vector<8x128xf32> to vector<128xf32>
      %63 = vector.shape_cast %62 : vector<128xf32> to vector<1x128xf32>
      %64 = arith.addf %61, %63 : vector<1x128xf32>
      %c0_27 = arith.constant 0 : index
      %c0_28 = arith.constant 0 : index
      %65 = vector.load %arg25[%c0_27, %c0_28] : memref<1x128xf32, #tpu.memory_space<vmem>>, vector<1x128xf32>
      tpu.vector_store %arg25[%c0_27, %c0_28], %64 {strides = array<i32>} : memref<1x128xf32, #tpu.memory_space<vmem>>, vector<1x128xf32>,
      %c0_29 = arith.constant 0 : index
      %c0_30 = arith.constant 0 : index
      %66 = vector.load %arg26[%c0_29, %c0_30] : memref<1x128xf32, #tpu.memory_space<vmem>>, vector<1x128xf32>
      %67 = arith.mulf %60, %60 : vector<8x128xf32>
      %cst_31 = arith.constant dense<0.000000e+00> : vector<128xf32>
      %68 = vector.multi_reduction <add>, %67, %cst_31 [0] : vector<8x128xf32> to vector<128xf32>
      %69 = vector.shape_cast %68 : vector<128xf32> to vector<1x128xf32>
      %70 = arith.addf %66, %69 : vector<1x128xf32>
      %c0_32 = arith.constant 0 : index
      %c0_33 = arith.constant 0 : index
      %71 = vector.load %arg26[%c0_32, %c0_33] : memref<1x128xf32, #tpu.memory_space<vmem>>, vector<1x128xf32>
      tpu.vector_store %arg26[%c0_32, %c0_33], %70 {strides = array<i32>} : memref<1x128xf32, #tpu.memory_space<vmem>>, vector<1x128xf32>,
      %72 = arith.index_cast %12 : i32 to index
      %c0_34 = arith.constant 0 : index
      %73 = vector.load %arg20[%72, %c0_34] : memref<8x128xf32, #tpu.memory_space<vmem>>, vector<8x128xf32>
      tpu.vector_store %arg20[%72, %c0_34], %55 {strides = array<i32>} : memref<8x128xf32, #tpu.memory_space<vmem>>, vector<8x128xf32>,
    } else {
    }
    %c3_i32 = arith.constant 3 : i32
    %22 = arith.cmpi eq, %arg0, %c3_i32 : i32
    %23 = arith.extui %22 : i1 to i32
    %c0_i32_4 = arith.constant 0 : i32
    %24 = arith.cmpi ne, %23, %c0_i32_4 : i32
    scf.if %24 {
      %25 = arith.index_cast %12 : i32 to index
      %c0_5 = arith.constant 0 : index
      %26 = vector.load %arg20[%25, %c0_5] : memref<8x128xf32, #tpu.memory_space<vmem>>, vector<8x128xf32>
      %c0_6 = arith.constant 0 : index
      %c0_7 = arith.constant 0 : index
      %27 = vector.load %arg25[%c0_6, %c0_7] : memref<1x128xf32, #tpu.memory_space<vmem>>, vector<1x128xf32>
      %28 = vector.broadcast %2 : f32 to vector<1x128xf32>
      %29 = arith.mulf %27, %28 : vector<1x128xf32>
      %c0_8 = arith.constant 0 : index
      %c0_9 = arith.constant 0 : index
      %30 = vector.load %arg26[%c0_8, %c0_9] : memref<1x128xf32, #tpu.memory_space<vmem>>, vector<1x128xf32>
      %31 = vector.broadcast %2 : f32 to vector<1x128xf32>
      %32 = arith.mulf %30, %31 : vector<1x128xf32>
      %33 = arith.mulf %29, %29 : vector<1x128xf32>
      %34 = arith.subf %32, %33 : vector<1x128xf32>
      %cst_10 = arith.constant 0.000000e+00 : f32
      %35 = vector.broadcast %cst_10 : f32 to vector<1x128xf32>
      %36 = arith.maximumf %34, %35 : vector<1x128xf32>
      %c0_11 = arith.constant 0 : index
      %c0_12 = arith.constant 0 : index
      %37 = vector.load %arg14[%c0_11, %c0_12] : memref<1x128xf32, #tpu.memory_space<vmem>>, vector<1x128xf32>
      %cst_13 = arith.constant 9.99999974E-6 : f32
      %38 = vector.broadcast %cst_13 : f32 to vector<1x128xf32>
      %39 = arith.addf %36, %38 : vector<1x128xf32>
      %40 = math.rsqrt %39 : vector<1x128xf32>
      %41 = arith.mulf %37, %40 : vector<1x128xf32>
      %c0_14 = arith.constant 0 : index
      %c0_15 = arith.constant 0 : index
      %42 = vector.load %arg15[%c0_14, %c0_15] : memref<1x128xf32, #tpu.memory_space<vmem>>, vector<1x128xf32>
      %43 = arith.mulf %29, %41 : vector<1x128xf32>
      %44 = arith.subf %42, %43 : vector<1x128xf32>
      %45 = vector.broadcast %41 : vector<1x128xf32> to vector<8x128xf32>
      %46 = arith.mulf %26, %45 : vector<8x128xf32>
      %47 = vector.broadcast %44 : vector<1x128xf32> to vector<8x128xf32>
      %48 = arith.addf %46, %47 : vector<8x128xf32>
      %c0_16 = arith.constant 0 : index
      %c0_17 = arith.constant 0 : index
      %49 = vector.load %arg16[%c0_16, %c0_17] : memref<128x128xf32, #tpu.memory_space<vmem>>, vector<128x128xf32>
      %cst_18 = arith.constant dense<0.000000e+00> : vector<8x128xf32>
      %50 = tpu.matmul %48, %49, %cst_18 {dimension_numbers = #tpu.dot_dimension_numbers<[1], [0], [0], [1], [0, 0, 1, 1], [], []>} : vector<8x128xf32>, vector<128x128xf32>, vector<8x128xf32> -> vector<8x128xf32>
      %c0_19 = arith.constant 0 : index
      %c0_20 = arith.constant 0 : index
      %51 = vector.load %arg17[%c0_19, %c0_20] : memref<1x128xf32, #tpu.memory_space<vmem>>, vector<1x128xf32>
      %52 = vector.broadcast %51 : vector<1x128xf32> to vector<8x128xf32>
      %53 = arith.addf %50, %52 : vector<8x128xf32>
      %c0_21 = arith.constant 0 : index
      %c0_22 = arith.constant 0 : index
      %54 = vector.load %arg18[%c0_21, %c0_22] : memref<8x128xf32, #tpu.memory_space<vmem>>, vector<8x128xf32>
      tpu.vector_store %arg18[%c0_21, %c0_22], %53 {strides = array<i32>} : memref<8x128xf32, #tpu.memory_space<vmem>>, vector<8x128xf32>,
    } else {
    }
    return
  }
  func.func @transform_0(%arg0: i32, %arg1: i32, %arg2: memref<1xi32, #tpu.memory_space<smem>>) -> (i32, i32) {
    %c0_i32 = arith.constant 0 : i32
    %0 = arith.cmpi eq, %arg0, %c0_i32 : i32
    %c0_i32_0 = arith.constant 0 : i32
    %1 = arith.select %0, %arg1, %c0_i32_0 : i32
    %c0_i32_1 = arith.constant 0 : i32
    %c0_i32_2 = arith.constant 0 : i32
    return %1, %c0_i32_1 : i32, i32
  }
  func.func @transform_1(%arg0: i32, %arg1: i32, %arg2: memref<1xi32, #tpu.memory_space<smem>>) -> (i32, i32) {
    %c0_i32 = arith.constant 0 : i32
    %c0_i32_0 = arith.constant 0 : i32
    %c0_i32_1 = arith.constant 0 : i32
    return %c0_i32, %c0_i32_0 : i32, i32
  }
  func.func @transform_2(%arg0: i32, %arg1: i32, %arg2: memref<1xi32, #tpu.memory_space<smem>>) -> (i32, i32) {
    %c0_i32 = arith.constant 0 : i32
    %c0_i32_0 = arith.constant 0 : i32
    %c0_i32_1 = arith.constant 0 : i32
    return %c0_i32, %c0_i32_0 : i32, i32
  }
  func.func @transform_3(%arg0: i32, %arg1: i32, %arg2: memref<1xi32, #tpu.memory_space<smem>>) -> (i32, i32) {
    %c0_i32 = arith.constant 0 : i32
    %c0_i32_0 = arith.constant 0 : i32
    %c0_i32_1 = arith.constant 0 : i32
    return %c0_i32, %c0_i32_0 : i32, i32
  }
  func.func @transform_4(%arg0: i32, %arg1: i32, %arg2: memref<1xi32, #tpu.memory_space<smem>>) -> (i32, i32) {
    %c0_i32 = arith.constant 0 : i32
    %c0_i32_0 = arith.constant 0 : i32
    %c0_i32_1 = arith.constant 0 : i32
    return %c0_i32, %c0_i32_0 : i32, i32
  }
  func.func @transform_5(%arg0: i32, %arg1: i32, %arg2: memref<1xi32, #tpu.memory_space<smem>>) -> (i32, i32) {
    %c0_i32 = arith.constant 0 : i32
    %c0_i32_0 = arith.constant 0 : i32
    %c0_i32_1 = arith.constant 0 : i32
    return %c0_i32, %c0_i32_0 : i32, i32
  }
  func.func @transform_6(%arg0: i32, %arg1: i32, %arg2: memref<1xi32, #tpu.memory_space<smem>>) -> (i32, i32) {
    %c0_i32 = arith.constant 0 : i32
    %c0_i32_0 = arith.constant 0 : i32
    %c0_i32_1 = arith.constant 0 : i32
    return %c0_i32, %c0_i32_0 : i32, i32
  }
  func.func @transform_7(%arg0: i32, %arg1: i32, %arg2: memref<1xi32, #tpu.memory_space<smem>>) -> (i32, i32) {
    %c0_i32 = arith.constant 0 : i32
    %c0_i32_0 = arith.constant 0 : i32
    %c0_i32_1 = arith.constant 0 : i32
    return %c0_i32, %c0_i32_0 : i32, i32
  }
  func.func @transform_8(%arg0: i32, %arg1: i32, %arg2: memref<1xi32, #tpu.memory_space<smem>>) -> (i32, i32) {
    %c0_i32 = arith.constant 0 : i32
    %c0_i32_0 = arith.constant 0 : i32
    %c0_i32_1 = arith.constant 0 : i32
    return %c0_i32, %c0_i32_0 : i32, i32
  }
  func.func @transform_9(%arg0: i32, %arg1: i32, %arg2: memref<1xi32, #tpu.memory_space<smem>>) -> (i32, i32) {
    %c0_i32 = arith.constant 0 : i32
    %c0_i32_0 = arith.constant 0 : i32
    %c0_i32_1 = arith.constant 0 : i32
    return %c0_i32, %c0_i32_0 : i32, i32
  }
  func.func @transform_10(%arg0: i32, %arg1: i32, %arg2: memref<1xi32, #tpu.memory_space<smem>>) -> (i32, i32) {
    %c0_i32 = arith.constant 0 : i32
    %c0_i32_0 = arith.constant 0 : i32
    %c0_i32_1 = arith.constant 0 : i32
    return %c0_i32, %c0_i32_0 : i32, i32
  }
  func.func @transform_11(%arg0: i32, %arg1: i32, %arg2: memref<1xi32, #tpu.memory_space<smem>>) -> (i32, i32) {
    %c0_i32 = arith.constant 0 : i32
    %c0_i32_0 = arith.constant 0 : i32
    %c0_i32_1 = arith.constant 0 : i32
    return %c0_i32, %c0_i32_0 : i32, i32
  }
  func.func @transform_12(%arg0: i32, %arg1: i32, %arg2: memref<1xi32, #tpu.memory_space<smem>>) -> (i32, i32) {
    %c0_i32 = arith.constant 0 : i32
    %c0_i32_0 = arith.constant 0 : i32
    %c0_i32_1 = arith.constant 0 : i32
    return %c0_i32, %c0_i32_0 : i32, i32
  }
  func.func @transform_13(%arg0: i32, %arg1: i32, %arg2: memref<1xi32, #tpu.memory_space<smem>>) -> (i32, i32) {
    %c0_i32 = arith.constant 0 : i32
    %c0_i32_0 = arith.constant 0 : i32
    %c0_i32_1 = arith.constant 0 : i32
    return %c0_i32, %c0_i32_0 : i32, i32
  }
  func.func @transform_14(%arg0: i32, %arg1: i32, %arg2: memref<1xi32, #tpu.memory_space<smem>>) -> (i32, i32) {
    %c0_i32 = arith.constant 0 : i32
    %c0_i32_0 = arith.constant 0 : i32
    %c0_i32_1 = arith.constant 0 : i32
    return %c0_i32, %c0_i32_0 : i32, i32
  }
  func.func @transform_15(%arg0: i32, %arg1: i32, %arg2: memref<1xi32, #tpu.memory_space<smem>>) -> (i32, i32) {
    %c3_i32 = arith.constant 3 : i32
    %0 = arith.cmpi eq, %arg0, %c3_i32 : i32
    %c0_i32 = arith.constant 0 : i32
    %1 = arith.select %0, %arg1, %c0_i32 : i32
    %c0_i32_0 = arith.constant 0 : i32
    %c0_i32_1 = arith.constant 0 : i32
    return %1, %c0_i32_0 : i32, i32
  }
}

</mosaic_0001>

<llo_original>
// kernel: tpu_custom_call.1
$region0: #{tpu_custom_call.1}
  #allocation0 [shape = 'u32[]', space=smem, size = 0x4, offset = 0x4, fixed_abs, tag = 'smem constant byte address 0x4 - core index']
  #allocation1 [shape = 'u32[72,128]{1,0:T(1,128)}', space=vmem, size = 0x9000, scoped, tag = 'internal scratch']
  #allocation2 [shape = 'f32[8,128]{1,0:T(8,128)}', space=vmem, size = 0x1000, scoped, tag = 'scratch operand']
  #allocation3 [shape = 'f32[8,128]{1,0:T(8,128)}', space=vmem, size = 0x1000, scoped, tag = 'scratch operand']
  #allocation4 [shape = 'f32[1,128]{1,0:T(1,128)}', space=vmem, size = 0x200, scoped, tag = 'scratch operand']
  #allocation5 [shape = 'f32[1,128]{1,0:T(1,128)}', space=vmem, size = 0x200, scoped, tag = 'scratch operand']
  #allocation6 [shape = 'f32[1,128]{1,0:T(1,128)}', space=vmem, size = 0x200, scoped, tag = 'scratch operand']
  #allocation7 [shape = 'f32[1,128]{1,0:T(1,128)}', space=vmem, size = 0x200, scoped, tag = 'scratch operand']
  #allocation8 [shape = 'f32[1,128]{1,0:T(1,128)}', space=vmem, size = 0x200, scoped, tag = 'scratch operand']
  #allocation9 [shape = 'f32[1,128]{1,0:T(1,128)}', space=vmem, size = 0x200, scoped, tag = 'scratch operand']
  #allocation10 [shape = 's32[1]{0}', space=sflag, size = 0x4, scoped, tag = 'scoped memory for tpu_custom_call.1']
  #allocation11 [shape = 's32[1]{0:T(128)S(6)}', space=smem, size = 0x200, scoped, tag = 'prefetched SMEM operand 0']
  %s0 = inlined_call_operand.<no memory space> [shape: s32[1], index: 0, kind: input, shape index: {}]
  %s1 = inlined_call_operand.hbm [shape: f32[8,128], index: 1, kind: input, shape index: {}]
  %s2 = inlined_call_operand.hbm [shape: f32[128,128], index: 2, kind: input, shape index: {}]
  %s3 = inlined_call_operand.vmem [shape: f32[1,128], index: 3, kind: input, shape index: {}]
  %s4 = inlined_call_operand.vmem [shape: f32[1,128], index: 4, kind: input, shape index: {}]
  %s5 = inlined_call_operand.vmem [shape: f32[1,128], index: 5, kind: input, shape index: {}]
  %s6 = inlined_call_operand.hbm [shape: f32[128,128], index: 6, kind: input, shape index: {}]
  %s7 = inlined_call_operand.vmem [shape: f32[1,128], index: 7, kind: input, shape index: {}]
  %s8 = inlined_call_operand.vmem [shape: f32[1,128], index: 8, kind: input, shape index: {}]
  %s9 = inlined_call_operand.vmem [shape: f32[1,128], index: 9, kind: input, shape index: {}]
  %s10 = inlined_call_operand.hbm [shape: f32[128,128], index: 10, kind: input, shape index: {}]
  %s11 = inlined_call_operand.vmem [shape: f32[1,128], index: 11, kind: input, shape index: {}]
  %s12 = inlined_call_operand.vmem [shape: f32[1,128], index: 12, kind: input, shape index: {}]
  %s13 = inlined_call_operand.vmem [shape: f32[1,128], index: 13, kind: input, shape index: {}]
  %s14 = inlined_call_operand.hbm [shape: f32[128,128], index: 14, kind: input, shape index: {}]
  %s15 = inlined_call_operand.vmem [shape: f32[1,128], index: 15, kind: input, shape index: {}]
  %s16 = inlined_call_operand.hbm [shape: f32[8,128], index: 16, kind: output, shape index: {}]
  %s17 = sld [smem:[#allocation0]]
  $region141: #{tpu_custom_call.1} parent=0
    _
  %s19 = ssub.s32 1, %s17
  %s20 = scalar_select 0, %s19, %s17
  %21 = sst [smem:[#allocation11]] %s0
  $region1: #{tpu_custom_call.1} parent=0
    #allocation12 [shape = 'u8[8192]{0}', space=vmem, size = 0x2000, scoped, tag = 'input window, operand 1']
    #allocation13 [shape = 's32[2]{0}', space=sflag, size = 0x8, scoped, tag = 'scoped memory for tpu_custom_call.1']
    #allocation14 [shape = 's32[2]{0}', space=sflag, size = 0x8, scoped, tag = 'scoped memory for tpu_custom_call.1']
    #allocation15 [shape = 'u8[65536]{0}', space=vmem, size = 0x10000, scoped, tag = 'input window, operand 2, single buffered']
    #allocation16 [shape = 's32[1]{0}', space=sflag, size = 0x4, scoped, tag = 'scoped memory for tpu_custom_call.1']
    #allocation17 [shape = 'u8[65536]{0}', space=vmem, size = 0x10000, scoped, tag = 'input window, operand 6, single buffered']
    #allocation18 [shape = 'u8[65536]{0}', space=vmem, size = 0x10000, scoped, tag = 'input window, operand 10, single buffered']
    #allocation19 [shape = 's32[1]{0}', space=sflag, size = 0x4, scoped, tag = 'scoped memory for tpu_custom_call.1']
    #allocation20 [shape = 'u8[65536]{0}', space=vmem, size = 0x10000, scoped, tag = 'input window, operand 14, single buffered']
    #allocation21 [shape = 'u8[8192]{0}', space=vmem, size = 0x2000, scoped, tag = 'output window, operand 0']
    %22 = vsyncpa [#allocation13], 0
    %s23 = scalar_lea.sflag [#allocation13], 1
    %24 = vsyncpa %s23, 0
    %25 = vsyncpa [#allocation16], 0
    %26 = vsyncpa [#allocation19], 0
    %27 = vsyncpa [#allocation14], 0
    %s28 = scalar_lea.sflag [#allocation14], 1
    %29 = vsyncpa %s28, 0
    loop: start=0, step=1, limit=6
    $region2: #{tpu_custom_call.1} parent=1 // loop_pre_header
      _
    $region3: #{tpu_custom_call.1} parent=1 // loop_header
      %s31 = sphi 0, %s35
      %p32 = scmp.ge.s32.totalorder %s31, 6
      %s38 = sphi 0, %s50
      %s39 = sphi 0, %s46
      %s40 = sphi 0, %s38
      %s41 = sphi 0, %s39
      %s42 = sphi 0, %s40
      %s43 = sphi 0, %s41
      %s57 = sphi 0, %s59
      %s60 = sphi 0, %s57
      %s61 = sphi 0, %s60
      %s77 = sphi 0, %s61
      %s81 = sphi 0, %s81
      %s83 = sphi 0, %s81
      %s84 = sphi 0, %s83
      %s98 = sphi 0, %s84
      %s102 = sphi 0, %s102
      %s104 = sphi 0, %s102
      %s105 = sphi 0, %s104
      %s119 = sphi 0, %s105
      %s123 = sphi 0, %s123
      %s125 = sphi 0, %s123
      %s126 = sphi 0, %s125
      %s140 = sphi 0, %s126
      %s144 = sphi 0, %s144
      %s146 = sphi 0, %s144
      %s147 = sphi 0, %s146
      %s161 = sphi 0, %s147
      %s165 = sphi 0, %s165
      %s167 = sphi 0, %s165
      %s168 = sphi 0, %s167
      %s182 = sphi 0, %s168
      %s186 = sphi 0, %s186
      %s188 = sphi 0, %s186
      %s189 = sphi 0, %s188
      %s203 = sphi 0, %s189
      %s207 = sphi 0, %s207
      %s209 = sphi 0, %s207
      %s210 = sphi 0, %s209
      %s224 = sphi 0, %s210
      %s228 = sphi 0, %s228
      %s230 = sphi 0, %s228
      %s231 = sphi 0, %s230
      %s245 = sphi 0, %s231
      %s249 = sphi 0, %s249
      %s251 = sphi 0, %s249
      %s252 = sphi 0, %s251
      %s266 = sphi 0, %s252
      %s270 = sphi 0, %s270
      %s272 = sphi 0, %s270
      %s273 = sphi 0, %s272
      %s287 = sphi 0, %s273
      %s291 = sphi 0, %s291
      %s293 = sphi 0, %s291
      %s294 = sphi 0, %s293
      %s308 = sphi 0, %s294
      %s312 = sphi 0, %s312
      %s314 = sphi 0, %s312
      %s315 = sphi 0, %s314
      %s329 = sphi 0, %s315
      %s333 = sphi 0, %s333
      %s335 = sphi 0, %s333
      %s336 = sphi 0, %s335
      %s350 = sphi 0, %s336
      %s354 = sphi 0, %s354
      %s356 = sphi 0, %s354
      %s357 = sphi 0, %s356
      %s371 = sphi 0, %s357
      %s381 = sphi 0, %s383
      %s384 = sphi 0, %s381
      %s385 = sphi 0, %s384
      %s401 = sphi 0, %s385
    $region4: #{tpu_custom_call.1} parent=1 // loop_header_branch
      %34 = sbr.rel (%p32) target = $region8
    $region5: #{tpu_custom_call.1} parent=1 // loop_body
      %s36 = ssub.s32 %s31, 1
      %s37 = ssub.s32 %s31, 2
      %s44 = sadd.s32 1, %s39
      %p45 = scmp.ge.s32.totalorder %s44, 1
      %s46 = scalar_select %p45, 0, %s44
      %s47 = sadd.s32 1, %s38
      %s48 = scalar_select %p45, %s47, %s38
      %p49 = scmp.ge.s32.totalorder %s48, 4
      %s50 = scalar_select %p49, 0, %s48
      %p51 = scmp.eq.s32.totalorder %s38, 0
      %s52 = scalar_select %p51, %s39, 0
      %p53 = scmp.eq.s32.totalorder %s50, 0
      %s54 = scalar_select %p53, %s46, 0
      %s55 = ssub.s32 %s52, %s54
      %p56 = scmp.eq.s32.totalorder %s55, 0
      %s58 = sadd.s32 %s57, 1
      %s59 = scalar_select %p56, %s57, %s58
      %p62 = pneg %p56
      %p63 = scmp.eq.s32.totalorder %s31, 3
      %p64 = por %p62, %p63
      %p65 = scmp.ne.s32.totalorder %s57, %s60
      %p66 = scmp.eq.s32.totalorder %s31, 0
      %p67 = por %p65, %p66
      %p68 = scmp.ne.s32.totalorder %s57, %s60
      %p69 = scmp.eq.s32.totalorder %s36, 3
      %p70 = por %p68, %p69
      %p71 = scmp.ne.s32.totalorder %s60, %s61
      %p72 = scmp.eq.s32.totalorder %s36, 0
      %p73 = por %p71, %p72
      %p74 = scmp.ne.s32.totalorder %s60, %s61
      %p75 = scmp.eq.s32.totalorder %s37, 3
      %p76 = por %p74, %p75
      %p78 = scmp.ne.s32.totalorder %s61, %s77
      %p79 = scmp.eq.s32.totalorder %s37, 0
      %p80 = por %p78, %p79
      %s82 = sadd.s32 %s81, 1
      %p85 = scmp.eq.s32.totalorder %s31, 3
      %p86 = scmp.ne.s32.totalorder %s81, %s83
      %p87 = scmp.eq.s32.totalorder %s31, 0
      %p88 = por %p86, %p87
      %p89 = scmp.ne.s32.totalorder %s81, %s83
      %p90 = scmp.eq.s32.totalorder %s36, 3
      %p91 = por %p89, %p90
      %p92 = scmp.ne.s32.totalorder %s83, %s84
      %p93 = scmp.eq.s32.totalorder %s36, 0
      %p94 = por %p92, %p93
      %p95 = scmp.ne.s32.totalorder %s83, %s84
      %p96 = scmp.eq.s32.totalorder %s37, 3
      %p97 = por %p95, %p96
      %p99 = scmp.ne.s32.totalorder %s84, %s98
      %p100 = scmp.eq.s32.totalorder %s37, 0
      %p101 = por %p99, %p100
      %s103 = sadd.s32 %s102, 1
      %p106 = scmp.eq.s32.totalorder %s31, 3
      %p107 = scmp.ne.s32.totalorder %s102, %s104
      %p108 = scmp.eq.s32.totalorder %s31, 0
      %p109 = por %p107, %p108
      %p110 = scmp.ne.s32.totalorder %s102, %s104
      %p111 = scmp.eq.s32.totalorder %s36, 3
      %p112 = por %p110, %p111
      %p113 = scmp.ne.s32.totalorder %s104, %s105
      %p114 = scmp.eq.s32.totalorder %s36, 0
      %p115 = por %p113, %p114
      %p116 = scmp.ne.s32.totalorder %s104, %s105
      %p117 = scmp.eq.s32.totalorder %s37, 3
      %p118 = por %p116, %p117
      %p120 = scmp.ne.s32.totalorder %s105, %s119
      %p121 = scmp.eq.s32.totalorder %s37, 0
      %p122 = por %p120, %p121
      %s124 = sadd.s32 %s123, 1
      %p127 = scmp.eq.s32.totalorder %s31, 3
      %p128 = scmp.ne.s32.totalorder %s123, %s125
      %p129 = scmp.eq.s32.totalorder %s31, 0
      %p130 = por %p128, %p129
      %p131 = scmp.ne.s32.totalorder %s123, %s125
      %p132 = scmp.eq.s32.totalorder %s36, 3
      %p133 = por %p131, %p132
      %p134 = scmp.ne.s32.totalorder %s125, %s126
      %p135 = scmp.eq.s32.totalorder %s36, 0
      %p136 = por %p134, %p135
      %p137 = scmp.ne.s32.totalorder %s125, %s126
      %p138 = scmp.eq.s32.totalorder %s37, 3
      %p139 = por %p137, %p138
      %p141 = scmp.ne.s32.totalorder %s126, %s140
      %p142 = scmp.eq.s32.totalorder %s37, 0
      %p143 = por %p141, %p142
      %s145 = sadd.s32 %s144, 1
      %p148 = scmp.eq.s32.totalorder %s31, 3
      %p149 = scmp.ne.s32.totalorder %s144, %s146
      %p150 = scmp.eq.s32.totalorder %s31, 0
      %p151 = por %p149, %p150
      %p152 = scmp.ne.s32.totalorder %s144, %s146
      %p153 = scmp.eq.s32.totalorder %s36, 3
      %p154 = por %p152, %p153
      %p155 = scmp.ne.s32.totalorder %s146, %s147
      %p156 = scmp.eq.s32.totalorder %s36, 0
      %p157 = por %p155, %p156
      %p158 = scmp.ne.s32.totalorder %s146, %s147
      %p159 = scmp.eq.s32.totalorder %s37, 3
      %p160 = por %p158, %p159
      %p162 = scmp.ne.s32.totalorder %s147, %s161
      %p163 = scmp.eq.s32.totalorder %s37, 0
      %p164 = por %p162, %p163
      %s166 = sadd.s32 %s165, 1
      %p169 = scmp.eq.s32.totalorder %s31, 3
      %p170 = scmp.ne.s32.totalorder %s165, %s167
      %p171 = scmp.eq.s32.totalorder %s31, 0
      %p172 = por %p170, %p171
      %p173 = scmp.ne.s32.totalorder %s165, %s167
      %p174 = scmp.eq.s32.totalorder %s36, 3
      %p175 = por %p173, %p174
      %p176 = scmp.ne.s32.totalorder %s167, %s168
      %p177 = scmp.eq.s32.totalorder %s36, 0
      %p178 = por %p176, %p177
      %p179 = scmp.ne.s32.totalorder %s167, %s168
      %p180 = scmp.eq.s32.totalorder %s37, 3
      %p181 = por %p179, %p180
      %p183 = scmp.ne.s32.totalorder %s168, %s182
      %p184 = scmp.eq.s32.totalorder %s37, 0
      %p185 = por %p183, %p184
      %s187 = sadd.s32 %s186, 1
      %p190 = scmp.eq.s32.totalorder %s31, 3
      %p191 = scmp.ne.s32.totalorder %s186, %s188
      %p192 = scmp.eq.s32.totalorder %s31, 0
      %p193 = por %p191, %p192
      %p194 = scmp.ne.s32.totalorder %s186, %s188
      %p195 = scmp.eq.s32.totalorder %s36, 3
      %p196 = por %p194, %p195
      %p197 = scmp.ne.s32.totalorder %s188, %s189
      %p198 = scmp.eq.s32.totalorder %s36, 0
      %p199 = por %p197, %p198
      %p200 = scmp.ne.s32.totalorder %s188, %s189
      %p201 = scmp.eq.s32.totalorder %s37, 3
      %p202 = por %p200, %p201
      %p204 = scmp.ne.s32.totalorder %s189, %s203
      %p205 = scmp.eq.s32.totalorder %s37, 0
      %p206 = por %p204, %p205
      %s208 = sadd.s32 %s207, 1
      %p211 = scmp.eq.s32.totalorder %s31, 3
      %p212 = scmp.ne.s32.totalorder %s207, %s209
      %p213 = scmp.eq.s32.totalorder %s31, 0
      %p214 = por %p212, %p213
      %p215 = scmp.ne.s32.totalorder %s207, %s209
      %p216 = scmp.eq.s32.totalorder %s36, 3
      %p217 = por %p215, %p216
      %p218 = scmp.ne.s32.totalorder %s209, %s210
      %p219 = scmp.eq.s32.totalorder %s36, 0
      %p220 = por %p218, %p219
      %p221 = scmp.ne.s32.totalorder %s209, %s210
      %p222 = scmp.eq.s32.totalorder %s37, 3
      %p223 = por %p221, %p222
      %p225 = scmp.ne.s32.totalorder %s210, %s224
      %p226 = scmp.eq.s32.totalorder %s37, 0
      %p227 = por %p225, %p226
      %s229 = sadd.s32 %s228, 1
      %p232 = scmp.eq.s32.totalorder %s31, 3
      %p233 = scmp.ne.s32.totalorder %s228, %s230
      %p234 = scmp.eq.s32.totalorder %s31, 0
      %p235 = por %p233, %p234
      %p236 = scmp.ne.s32.totalorder %s228, %s230
      %p237 = scmp.eq.s32.totalorder %s36, 3
      %p238 = por %p236, %p237
      %p239 = scmp.ne.s32.totalorder %s230, %s231
      %p240 = scmp.eq.s32.totalorder %s36, 0
      %p241 = por %p239, %p240
      %p242 = scmp.ne.s32.totalorder %s230, %s231
      %p243 = scmp.eq.s32.totalorder %s37, 3
      %p244 = por %p242, %p243
      %p246 = scmp.ne.s32.totalorder %s231, %s245
      %p247 = scmp.eq.s32.totalorder %s37, 0
      %p248 = por %p246, %p247
      %s250 = sadd.s32 %s249, 1
      %p253 = scmp.eq.s32.totalorder %s31, 3
      %p254 = scmp.ne.s32.totalorder %s249, %s251
      %p255 = scmp.eq.s32.totalorder %s31, 0
      %p256 = por %p254, %p255
      %p257 = scmp.ne.s32.totalorder %s249, %s251
      %p258 = scmp.eq.s32.totalorder %s36, 3
      %p259 = por %p257, %p258
      %p260 = scmp.ne.s32.totalorder %s251, %s252
      %p261 = scmp.eq.s32.totalorder %s36, 0
      %p262 = por %p260, %p261
      %p263 = scmp.ne.s32.totalorder %s251, %s252
      %p264 = scmp.eq.s32.totalorder %s37, 3
      %p265 = por %p263, %p264
      %p267 = scmp.ne.s32.totalorder %s252, %s266
      %p268 = scmp.eq.s32.totalorder %s37, 0
      %p269 = por %p267, %p268
      %s271 = sadd.s32 %s270, 1
      %p274 = scmp.eq.s32.totalorder %s31, 3
      %p275 = scmp.ne.s32.totalorder %s270, %s272
      %p276 = scmp.eq.s32.totalorder %s31, 0
      %p277 = por %p275, %p276
      %p278 = scmp.ne.s32.totalorder %s270, %s272
      %p279 = scmp.eq.s32.totalorder %s36, 3
      %p280 = por %p278, %p279
      %p281 = scmp.ne.s32.totalorder %s272, %s273
      %p282 = scmp.eq.s32.totalorder %s36, 0
      %p283 = por %p281, %p282
      %p284 = scmp.ne.s32.totalorder %s272, %s273
      %p285 = scmp.eq.s32.totalorder %s37, 3
      %p286 = por %p284, %p285
      %p288 = scmp.ne.s32.totalorder %s273, %s287
      %p289 = scmp.eq.s32.totalorder %s37, 0
      %p290 = por %p288, %p289
      %s292 = sadd.s32 %s291, 1
      %p295 = scmp.eq.s32.totalorder %s31, 3
      %p296 = scmp.ne.s32.totalorder %s291, %s293
      %p297 = scmp.eq.s32.totalorder %s31, 0
      %p298 = por %p296, %p297
      %p299 = scmp.ne.s32.totalorder %s291, %s293
      %p300 = scmp.eq.s32.totalorder %s36, 3
      %p301 = por %p299, %p300
      %p302 = scmp.ne.s32.totalorder %s293, %s294
      %p303 = scmp.eq.s32.totalorder %s36, 0
      %p304 = por %p302, %p303
      %p305 = scmp.ne.s32.totalorder %s293, %s294
      %p306 = scmp.eq.s32.totalorder %s37, 3
      %p307 = por %p305, %p306
      %p309 = scmp.ne.s32.totalorder %s294, %s308
      %p310 = scmp.eq.s32.totalorder %s37, 0
      %p311 = por %p309, %p310
      %s313 = sadd.s32 %s312, 1
      %p316 = scmp.eq.s32.totalorder %s31, 3
      %p317 = scmp.ne.s32.totalorder %s312, %s314
      %p318 = scmp.eq.s32.totalorder %s31, 0
      %p319 = por %p317, %p318
      %p320 = scmp.ne.s32.totalorder %s312, %s314
      %p321 = scmp.eq.s32.totalorder %s36, 3
      %p322 = por %p320, %p321
      %p323 = scmp.ne.s32.totalorder %s314, %s315
      %p324 = scmp.eq.s32.totalorder %s36, 0
      %p325 = por %p323, %p324
      %p326 = scmp.ne.s32.totalorder %s314, %s315
      %p327 = scmp.eq.s32.totalorder %s37, 3
      %p328 = por %p326, %p327
      %p330 = scmp.ne.s32.totalorder %s315, %s329
      %p331 = scmp.eq.s32.totalorder %s37, 0
      %p332 = por %p330, %p331
      %s334 = sadd.s32 %s333, 1
      %p337 = scmp.eq.s32.totalorder %s31, 3
      %p338 = scmp.ne.s32.totalorder %s333, %s335
      %p339 = scmp.eq.s32.totalorder %s31, 0
      %p340 = por %p338, %p339
      %p341 = scmp.ne.s32.totalorder %s333, %s335
      %p342 = scmp.eq.s32.totalorder %s36, 3
      %p343 = por %p341, %p342
      %p344 = scmp.ne.s32.totalorder %s335, %s336
      %p345 = scmp.eq.s32.totalorder %s36, 0
      %p346 = por %p344, %p345
      %p347 = scmp.ne.s32.totalorder %s335, %s336
      %p348 = scmp.eq.s32.totalorder %s37, 3
      %p349 = por %p347, %p348
      %p351 = scmp.ne.s32.totalorder %s336, %s350
      %p352 = scmp.eq.s32.totalorder %s37, 0
      %p353 = por %p351, %p352
      %s355 = sadd.s32 %s354, 1
      %p358 = scmp.eq.s32.totalorder %s31, 3
      %p359 = scmp.ne.s32.totalorder %s354, %s356
      %p360 = scmp.eq.s32.totalorder %s31, 0
      %p361 = por %p359, %p360
      %p362 = scmp.ne.s32.totalorder %s354, %s356
      %p363 = scmp.eq.s32.totalorder %s36, 3
      %p364 = por %p362, %p363
      %p365 = scmp.ne.s32.totalorder %s356, %s357
      %p366 = scmp.eq.s32.totalorder %s36, 0
      %p367 = por %p365, %p366
      %p368 = scmp.ne.s32.totalorder %s356, %s357
      %p369 = scmp.eq.s32.totalorder %s37, 3
      %p370 = por %p368, %p369
      %p372 = scmp.ne.s32.totalorder %s357, %s371
      %p373 = scmp.eq.s32.totalorder %s37, 0
      %p374 = por %p372, %p373
      %p375 = scmp.eq.s32.totalorder %s38, 3
      %s376 = scalar_select %p375, %s39, 0
      %p377 = scmp.eq.s32.totalorder %s50, 3
      %s378 = scalar_select %p377, %s46, 0
      %s379 = ssub.s32 %s376, %s378
      %p380 = scmp.eq.s32.totalorder %s379, 0
      %s382 = sadd.s32 %s381, 1
      %s383 = scalar_select %p380, %s381, %s382
      %p386 = pneg %p380
      %p387 = scmp.eq.s32.totalorder %s31, 3
      %p388 = por %p386, %p387
      %p389 = scmp.ne.s32.totalorder %s381, %s384
      %p390 = scmp.eq.s32.totalorder %s31, 0
      %p391 = por %p389, %p390
      %p392 = scmp.ne.s32.totalorder %s381, %s384
      %p393 = scmp.eq.s32.totalorder %s36, 3
      %p394 = por %p392, %p393
      %p395 = scmp.ne.s32.totalorder %s384, %s385
      %p396 = scmp.eq.s32.totalorder %s36, 0
      %p397 = por %p395, %p396
      %p398 = scmp.ne.s32.totalorder %s384, %s385
      %p399 = scmp.eq.s32.totalorder %s37, 3
      %p400 = por %p398, %p399
      %p402 = scmp.ne.s32.totalorder %s385, %s401
      %p403 = scmp.eq.s32.totalorder %s37, 0
      %p404 = por %p402, %p403
      %p405 = scmp.le.s32.totalorder 1, %s31
      %p406 = scmp.lt.s32.totalorder %s31, 5
      %p407 = pnand %p405, %p406
      %p408 = pneg %p407
      // Predicated region
      $region9: #{tpu_custom_call.1} parent=5 // pred_check
        _
      $region10: #{tpu_custom_call.1} parent=5 // pred_check_branch
        %410 = sbr.rel (%p407) target = $region12
      $region11: #{tpu_custom_call.1} parent=5 // pred_region
        %s411 = ssub.s32 %s31, 1
        // Predicated region
        $region13: #{tpu_custom_call.1} parent=11 // pred_check
          %p412 = pneg %p94
        $region14: #{tpu_custom_call.1} parent=11 // pred_check_branch
          %414 = sbr.rel (%p412) target = $region16
        $region15: #{tpu_custom_call.1} parent=11 // pred_region
          %416 = vsyncadd [#allocation16], 0
          %s417 = sshll.u32 %s2, 4
          %s418 = int_to_ptr.hbm [resolvable:$true] %s417
          %s419 = sshll.u32 [#allocation15], 4
          %s420 = int_to_ptr.vmem [resolvable:$true] %s419
          %425 = dma.hbm_to_vmem [thread:$0]  %s418, 2048, %s420, [#allocation16], 128, 128, 8
        $region16: #{tpu_custom_call.1} parent=11 // pred_fallthru
          _
        // Predicated region
        $region17: #{tpu_custom_call.1} parent=11 // pred_check
          %p426 = pneg %p115
        $region18: #{tpu_custom_call.1} parent=11 // pred_check_branch
          %428 = sbr.rel (%p426) target = $region20
        $region19: #{tpu_custom_call.1} parent=11 // pred_region
          _
        $region20: #{tpu_custom_call.1} parent=11 // pred_fallthru
          _
        // Predicated region
        $region21: #{tpu_custom_call.1} parent=11 // pred_check
          %p429 = pneg %p136
        $region22: #{tpu_custom_call.1} parent=11 // pred_check_branch
          %431 = sbr.rel (%p429) target = $region24
        $region23: #{tpu_custom_call.1} parent=11 // pred_region
          _
        $region24: #{tpu_custom_call.1} parent=11 // pred_fallthru
          _
        // Predicated region
        $region25: #{tpu_custom_call.1} parent=11 // pred_check
          %p432 = pneg %p157
        $region26: #{tpu_custom_call.1} parent=11 // pred_check_branch
          %434 = sbr.rel (%p432) target = $region28
        $region27: #{tpu_custom_call.1} parent=11 // pred_region
          _
        $region28: #{tpu_custom_call.1} parent=11 // pred_fallthru
          _
        // Predicated region
        $region29: #{tpu_custom_call.1} parent=11 // pred_check
          %p435 = pneg %p178
        $region30: #{tpu_custom_call.1} parent=11 // pred_check_branch
          %437 = sbr.rel (%p435) target = $region32
        $region31: #{tpu_custom_call.1} parent=11 // pred_region
          %439 = vsyncadd [#allocation16], 0
          %s440 = sshll.u32 %s6, 4
          %s441 = int_to_ptr.hbm [resolvable:$true] %s440
          %s442 = sshll.u32 [#allocation17], 4
          %s443 = int_to_ptr.vmem [resolvable:$true] %s442
          %448 = dma.hbm_to_vmem [thread:$0]  %s441, 2048, %s443, [#allocation16], 128, 128, 8
        $region32: #{tpu_custom_call.1} parent=11 // pred_fallthru
          _
        // Predicated region
        $region33: #{tpu_custom_call.1} parent=11 // pred_check
          %p449 = pneg %p199
        $region34: #{tpu_custom_call.1} parent=11 // pred_check_branch
          %451 = sbr.rel (%p449) target = $region36
        $region35: #{tpu_custom_call.1} parent=11 // pred_region
          _
        $region36: #{tpu_custom_call.1} parent=11 // pred_fallthru
          _
        // Predicated region
        $region37: #{tpu_custom_call.1} parent=11 // pred_check
          %p452 = pneg %p220
        $region38: #{tpu_custom_call.1} parent=11 // pred_check_branch
          %454 = sbr.rel (%p452) target = $region40
        $region39: #{tpu_custom_call.1} parent=11 // pred_region
          _
        $region40: #{tpu_custom_call.1} parent=11 // pred_fallthru
          _
        // Predicated region
        $region41: #{tpu_custom_call.1} parent=11 // pred_check
          %p455 = pneg %p241
        $region42: #{tpu_custom_call.1} parent=11 // pred_check_branch
          %457 = sbr.rel (%p455) target = $region44
        $region43: #{tpu_custom_call.1} parent=11 // pred_region
          _
        $region44: #{tpu_custom_call.1} parent=11 // pred_fallthru
          _
        // Predicated region
        $region45: #{tpu_custom_call.1} parent=11 // pred_check
          %p458 = pneg %p262
        $region46: #{tpu_custom_call.1} parent=11 // pred_check_branch
          %460 = sbr.rel (%p458) target = $region48
        $region47: #{tpu_custom_call.1} parent=11 // pred_region
          %462 = vsyncadd [#allocation19], 0
          %s463 = sshll.u32 %s10, 4
          %s464 = int_to_ptr.hbm [resolvable:$true] %s463
          %s465 = sshll.u32 [#allocation18], 4
          %s466 = int_to_ptr.vmem [resolvable:$true] %s465
          %471 = dma.hbm_to_vmem [thread:$0]  %s464, 2048, %s466, [#allocation19], 128, 128, 8
        $region48: #{tpu_custom_call.1} parent=11 // pred_fallthru
          _
        // Predicated region
        $region49: #{tpu_custom_call.1} parent=11 // pred_check
          %p472 = pneg %p283
        $region50: #{tpu_custom_call.1} parent=11 // pred_check_branch
          %474 = sbr.rel (%p472) target = $region52
        $region51: #{tpu_custom_call.1} parent=11 // pred_region
          _
        $region52: #{tpu_custom_call.1} parent=11 // pred_fallthru
          _
        // Predicated region
        $region53: #{tpu_custom_call.1} parent=11 // pred_check
          %p475 = pneg %p304
        $region54: #{tpu_custom_call.1} parent=11 // pred_check_branch
          %477 = sbr.rel (%p475) target = $region56
        $region55: #{tpu_custom_call.1} parent=11 // pred_region
          _
        $region56: #{tpu_custom_call.1} parent=11 // pred_fallthru
          _
        // Predicated region
        $region57: #{tpu_custom_call.1} parent=11 // pred_check
          %p478 = pneg %p325
        $region58: #{tpu_custom_call.1} parent=11 // pred_check_branch
          %480 = sbr.rel (%p478) target = $region60
        $region59: #{tpu_custom_call.1} parent=11 // pred_region
          _
        $region60: #{tpu_custom_call.1} parent=11 // pred_fallthru
          _
        // Predicated region
        $region61: #{tpu_custom_call.1} parent=11 // pred_check
          %p481 = pneg %p346
        $region62: #{tpu_custom_call.1} parent=11 // pred_check_branch
          %483 = sbr.rel (%p481) target = $region64
        $region63: #{tpu_custom_call.1} parent=11 // pred_region
          %485 = vsyncadd [#allocation19], 0
          %s486 = sshll.u32 %s14, 4
          %s487 = int_to_ptr.hbm [resolvable:$true] %s486
          %s488 = sshll.u32 [#allocation20], 4
          %s489 = int_to_ptr.vmem [resolvable:$true] %s488
          %494 = dma.hbm_to_vmem [thread:$0]  %s487, 2048, %s489, [#allocation19], 128, 128, 8
        $region64: #{tpu_custom_call.1} parent=11 // pred_fallthru
          _
        // Predicated region
        $region65: #{tpu_custom_call.1} parent=11 // pred_check
          %p495 = pneg %p367
        $region66: #{tpu_custom_call.1} parent=11 // pred_check_branch
          %497 = sbr.rel (%p495) target = $region68
        $region67: #{tpu_custom_call.1} parent=11 // pred_region
          _
        $region68: #{tpu_custom_call.1} parent=11 // pred_fallthru
          _
      $region12: #{tpu_custom_call.1} parent=5 // pred_fallthru
        _
      %p498 = scmp.lt.s32.totalorder %s31, 4
      // Predicated region
      $region69: #{tpu_custom_call.1} parent=5 // pred_check
        %p499 = pneg %p498
      $region70: #{tpu_custom_call.1} parent=5 // pred_check_branch
        %501 = sbr.rel (%p499) target = $region72
      $region71: #{tpu_custom_call.1} parent=5 // pred_region
        // Predicated region
        $region73: #{tpu_custom_call.1} parent=71 // pred_check
          %p502 = pneg %p67
        $region74: #{tpu_custom_call.1} parent=71 // pred_check_branch
          %504 = sbr.rel (%p502) target = $region76
        $region75: #{tpu_custom_call.1} parent=71 // pred_region
          %s505 = sand.u32 %s57, 1
          %s506 = scalar_lea.sflag [#allocation13], %s505
          %s507 = sand.u32 %s57, 1
          %s508 = smul.addr %s507, 8
          %s509 = scalar_lea.vmem [#allocation12], %s508
          %p510 = scmp.eq.s32.totalorder %s38, 0
          %s511 = scalar_select %p510, %s39, 0
          %513 = vsyncadd %s506, 0
          %s514 = smul.addr %s511, 8
          %s515 = scalar_lea.hbm %s1, %s514
          %s517 = sshll.u32 %s515, 4
          %s518 = int_to_ptr.hbm [resolvable:$true] %s517
          %s519 = sshll.u32 %s509, 4
          %s520 = int_to_ptr.vmem [resolvable:$true] %s519
          %522 = dma.hbm_to_vmem [thread:$0]  %s518, 128, %s520, %s506
        $region76: #{tpu_custom_call.1} parent=71 // pred_fallthru
          _
      $region72: #{tpu_custom_call.1} parent=5 // pred_fallthru
        _
      %p523 = scmp.le.s32.totalorder 1, %s31
      %p524 = scmp.lt.s32.totalorder %s31, 5
      %p525 = pnand %p523, %p524
      %p526 = pneg %p525
      // Predicated region
      $region77: #{tpu_custom_call.1} parent=5 // pred_check
        _
      $region78: #{tpu_custom_call.1} parent=5 // pred_check_branch
        %528 = sbr.rel (%p525) target = $region80
      $region79: #{tpu_custom_call.1} parent=5 // pred_region
        %s529 = ssub.s32 %s31, 1
        %s530 = sand.u32 %s60, 1
        %s531 = scalar_lea.sflag [#allocation13], %s530
        %s532 = sand.u32 %s60, 1
        %s533 = smul.addr %s532, 8
        %s534 = scalar_lea.vmem [#allocation12], %s533
        // Predicated region
        $region81: #{tpu_custom_call.1} parent=79 // pred_check
          %p535 = pneg %p73
        $region82: #{tpu_custom_call.1} parent=79 // pred_check_branch
          %537 = sbr.rel (%p535) target = $region84
        $region83: #{tpu_custom_call.1} parent=79 // pred_region
          %539 = dma.done %s531, 128
        $region84: #{tpu_custom_call.1} parent=79 // pred_fallthru
          _
        // Predicated region
        $region85: #{tpu_custom_call.1} parent=79 // pred_check
          %p540 = pneg %p94
        $region86: #{tpu_custom_call.1} parent=79 // pred_check_branch
          %542 = sbr.rel (%p540) target = $region88
        $region87: #{tpu_custom_call.1} parent=79 // pred_region
          %544 = dma.done [#allocation16], 2048
        $region88: #{tpu_custom_call.1} parent=79 // pred_fallthru
          _
        // Predicated region
        $region89: #{tpu_custom_call.1} parent=79 // pred_check
          %p545 = pneg %p178
        $region90: #{tpu_custom_call.1} parent=79 // pred_check_branch
          %547 = sbr.rel (%p545) target = $region92
        $region91: #{tpu_custom_call.1} parent=79 // pred_region
          %549 = dma.done [#allocation16], 2048
        $region92: #{tpu_custom_call.1} parent=79 // pred_fallthru
          _
        // Predicated region
        $region93: #{tpu_custom_call.1} parent=79 // pred_check
          %p550 = pneg %p262
        $region94: #{tpu_custom_call.1} parent=79 // pred_check_branch
          %552 = sbr.rel (%p550) target = $region96
        $region95: #{tpu_custom_call.1} parent=79 // pred_region
          %554 = dma.done [#allocation19], 2048
        $region96: #{tpu_custom_call.1} parent=79 // pred_fallthru
          _
        // Predicated region
        $region97: #{tpu_custom_call.1} parent=79 // pred_check
          %p555 = pneg %p346
        $region98: #{tpu_custom_call.1} parent=79 // pred_check_branch
          %557 = sbr.rel (%p555) target = $region100
        $region99: #{tpu_custom_call.1} parent=79 // pred_region
          %559 = dma.done [#allocation19], 2048
        $region100: #{tpu_custom_call.1} parent=79 // pred_fallthru
          _
        %s560 = sand.u32 %s60, 1
        %s561 = scalar_lea.sflag [#allocation13], %s560
        %s562 = sand.u32 %s60, 1
        %s563 = smul.addr %s562, 8
        %s564 = scalar_lea.vmem [#allocation12], %s563
        %p565 = pneg %p73
        %p566 = pneg %p70
        %p567 = pneg %p94
        %p568 = pneg %p91
        %p569 = pneg %p115
        %p570 = pneg %p112
        %p571 = pneg %p136
        %p572 = pneg %p133
        %p573 = pneg %p157
        %p574 = pneg %p154
        %p575 = pneg %p178
        %p576 = pneg %p175
        %p577 = pneg %p199
        %p578 = pneg %p196
        %p579 = pneg %p220
        %p580 = pneg %p217
        %p581 = pneg %p241
        %p582 = pneg %p238
        %p583 = pneg %p262
        %p584 = pneg %p259
        %p585 = pneg %p283
        %p586 = pneg %p280
        %p587 = pneg %p304
        %p588 = pneg %p301
        %p589 = pneg %p325
        %p590 = pneg %p322
        %p591 = pneg %p346
        %p592 = pneg %p343
        %p593 = pneg %p367
        %p594 = pneg %p364
        %p595 = pneg %p397
        %p596 = pneg %p394
        %s597 = sand.u32 %s384, 1
        %s598 = scalar_lea.sflag [#allocation14], %s597
        %s599 = sand.u32 %s384, 1
        %s600 = smul.addr %s599, 8
        %s601 = scalar_lea.vmem [#allocation21], %s600
        %p602 = scmp.eq.s32.totalorder %s40, 0
        %s603 = scalar_select %p602, %s41, 0
        %p604 = scmp.eq.s32.totalorder %s40, 3
        %s605 = scalar_select %p604, %s41, 0
        %s606 = sld [smem:[#allocation11]]
        %s607 = scvt.s32.f32 %s606
        %v608 = vstv %s607
        %v609 = vrcp.pop %v608
        %v610 = vmul.f32 %v608, %v609
        %v611 = vsub.f32 1.0, %v610
        %v612 = vmul.f32 %v609, %v611
        %v613 = vadd.f32 %v609, %v612
        %vm614 = vweird.f32 %v608
        %vm615 = vweird.f32 %v609
        %vm616 = vmor %vm614, %vm615
        %v617 = vsel %vm616, %v609, %v613
        %v618 = vand.u32 2147483647, %v608
        %vm619 = vcmp.eq.f32.partialorder %v618, 8.507059e+37
        %v620 = vand.u32 %v608, 2147483648
        %v621 = vor.u32 1.1754944e-38, %v620
        %v622 = vsel %vm619, %v621, %v617
        %s623 = vtos %v622
        %v624 = vlaneseq
        %v625 = vshrl.u32 %v624, 7
        %s626 = smul.u32 %s41, 8
        %v627 = vstv %s626
        %v628 = vadd.s32 %v625, %v627
        %v629 = vstv %s606
        %vm630 = vcmp.lt.s32.totalorder %v628, %v629
        %v631 = vsel %vm630, 1, 0
        %v632 = vcvt.s32.f32 %v631
        %p633 = scmp.eq.s32.totalorder %s40, 0
        // Predicated region
        $region101: #{tpu_custom_call.1} parent=79 // pred_check
          %p634 = pneg %p633
        $region102: #{tpu_custom_call.1} parent=79 // pred_check_branch
          %636 = sbr.rel (%p634) target = $region104
        $region103: #{tpu_custom_call.1} parent=79 // pred_region
          %v637 = vld [vmem:[%s534] sm:$0xff]
          %v638 = vld [vmem:[#allocation15] sm:$0xff]
          %v639 = vld [vmem:[#allocation15 + $0x8] sm:$0xff]
          %v640 = vld [vmem:[#allocation15 + $0x10] sm:$0xff]
          %v641 = vld [vmem:[#allocation15 + $0x18] sm:$0xff]
          %v642 = vld [vmem:[#allocation15 + $0x20] sm:$0xff]
          %v643 = vld [vmem:[#allocation15 + $0x28] sm:$0xff]
          %v644 = vld [vmem:[#allocation15 + $0x30] sm:$0xff]
          %v645 = vld [vmem:[#allocation15 + $0x38] sm:$0xff]
          %v646 = vld [vmem:[#allocation15 + $0x40] sm:$0xff]
          %v647 = vld [vmem:[#allocation15 + $0x48] sm:$0xff]
          %v648 = vld [vmem:[#allocation15 + $0x50] sm:$0xff]
          %v649 = vld [vmem:[#allocation15 + $0x58] sm:$0xff]
          %v650 = vld [vmem:[#allocation15 + $0x60] sm:$0xff]
          %v651 = vld [vmem:[#allocation15 + $0x68] sm:$0xff]
          %v652 = vld [vmem:[#allocation15 + $0x70] sm:$0xff]
          %v653 = vld [vmem:[#allocation15 + $0x78] sm:$0xff]
          %v654 = vld [vmem:[%s3] sm:$0x1]
          %v656 = vperm.slane %v654, 0
          %658 = vmatpush.msra.mxu0 %v653
          %659 = vmatpush.msra.mxu0 %v652
          %660 = vmatpush.msra.mxu0 %v651
          %661 = vmatpush.msra.mxu0 %v650
          %662 = vmatpush.msra.mxu0 %v649
          %663 = vmatpush.msra.mxu0 %v648
          %664 = vmatpush.msra.mxu0 %v647
          %665 = vmatpush.msra.mxu0 %v646
          %666 = vmatpush.msra.mxu0 %v645
          %667 = vmatpush.msra.mxu0 %v644
          %668 = vmatpush.msra.mxu0 %v643
          %669 = vmatpush.msra.mxu0 %v642
          %670 = vmatpush.msra.mxu0 %v641
          %671 = vmatpush.msra.mxu0 %v640
          %672 = vmatpush.msra.mxu0 %v639
          %673 = vmatpush.msra.mxu0 %v638
          %674 = vmatmul.f32.gmra.mxu0 %v637
          %v675 = vpop.f32.mrf.mxu0
          %v676 = vadd.f32 %v656, %v675
          %677 = vdwg.mxu0
          %v678 = vmax.f32 %v676, 0.0
          %p679 = scmp.eq.s32.totalorder %s41, 0
          // Predicated region
          $region105: #{tpu_custom_call.1} parent=103 // pred_check
            %p680 = pneg %p679
          $region106: #{tpu_custom_call.1} parent=103 // pred_check_branch
            %682 = sbr.rel (%p680) target = $region108
          $region107: #{tpu_custom_call.1} parent=103 // pred_region
            %683 = vst [vmem:[#allocation4] sm:$0x1] 0.0
            %684 = vst [vmem:[#allocation5] sm:$0x1] 0.0
          $region108: #{tpu_custom_call.1} parent=103 // pred_fallthru
            _
          %v685 = vmul.f32 %v678, %v632
          %v686 = vld [vmem:[#allocation4] sm:$0x1]
          %v687 = vrot.slane %v685, 4
          %v688 = vadd.f32 %v685, %v687
          %v689 = vrot.slane %v688, 2
          %v690 = vadd.f32 %v688, %v689
          %v691 = vrot.slane %v690, 1
          %v692 = vadd.f32 %v690, %v691
          %v693 = vadd.f32 %v686, %v692
          %694 = vst [vmem:[#allocation4] sm:$0x1] %v693
          %v695 = vld [vmem:[#allocation5] sm:$0x1]
          %v696 = vmul.f32 %v685, %v685
          %v697 = vrot.slane %v696, 4
          %v698 = vadd.f32 %v696, %v697
          %v699 = vrot.slane %v698, 2
          %v700 = vadd.f32 %v698, %v699
          %v701 = vrot.slane %v700, 1
          %v702 = vadd.f32 %v700, %v701
          %v703 = vadd.f32 %v695, %v702
          %704 = vst [vmem:[#allocation5] sm:$0x1] %v703
          %s705 = scalar_lea.vmem [#allocation2], %s626
          %706 = vst [vmem:[%s705] sm:$0xff] %v678
        $region104: #{tpu_custom_call.1} parent=79 // pred_fallthru
          _
        %p707 = scmp.eq.s32.totalorder %s40, 1
        // Predicated region
        $region109: #{tpu_custom_call.1} parent=79 // pred_check
          %p708 = pneg %p707
        $region110: #{tpu_custom_call.1} parent=79 // pred_check_branch
          %710 = sbr.rel (%p708) target = $region112
        $region111: #{tpu_custom_call.1} parent=79 // pred_region
          %s711 = scalar_lea.vmem [#allocation2], %s626
          %v712 = vld [vmem:[%s711] sm:$0xff]
          %v713 = vld [vmem:[#allocation4] sm:$0x1]
          %v714 = vstv %s623
          %v715 = vmul.f32 %v713, %v714
          %v716 = vld [vmem:[#allocation5] sm:$0x1]
          %v717 = vmul.f32 %v716, %v714
          %v718 = vmul.f32 %v715, %v715
          %v719 = vsub.f32 %v717, %v718
          %v720 = vmax.f32 %v719, 0.0
          %v721 = vld [vmem:[%s4] sm:$0x1]
          %v722 = vadd.f32 %v720, 1e-05
          %v723 = vrsqrt.pop %v722
          %v724 = vmul.f32 %v723, %v722
          %v725 = vmul.f32 %v724, %v723
          %v726 = vmul.f32 0.5, %v725
          %v727 = vsub.f32 1.5, %v726
          %v728 = vmul.f32 %v723, %v727
          %vm729 = vweird.f32 %v722
          %vm730 = vweird.f32 %v723
          %vm731 = vmor %vm729, %vm730
          %v732 = vsel %vm731, %v723, %v728
          %v733 = vmul.f32 %v721, %v732
          %v734 = vld [vmem:[%s5] sm:$0x1]
          %v735 = vmul.f32 %v715, %v733
          %v736 = vsub.f32 %v734, %v735
          %v738 = vperm.slane %v733, 0
          %v740 = vmul.f32 %v712, %v738
          %v742 = vperm.slane %v736, 0
          %v744 = vadd.f32 %v740, %v742
          %v745 = vld [vmem:[#allocation17] sm:$0xff]
          %v746 = vld [vmem:[#allocation17 + $0x8] sm:$0xff]
          %v747 = vld [vmem:[#allocation17 + $0x10] sm:$0xff]
          %v748 = vld [vmem:[#allocation17 + $0x18] sm:$0xff]
          %v749 = vld [vmem:[#allocation17 + $0x20] sm:$0xff]
          %v750 = vld [vmem:[#allocation17 + $0x28] sm:$0xff]
          %v751 = vld [vmem:[#allocation17 + $0x30] sm:$0xff]
          %v752 = vld [vmem:[#allocation17 + $0x38] sm:$0xff]
          %v753 = vld [vmem:[#allocation17 + $0x40] sm:$0xff]
          %v754 = vld [vmem:[#allocation17 + $0x48] sm:$0xff]
          %v755 = vld [vmem:[#allocation17 + $0x50] sm:$0xff]
          %v756 = vld [vmem:[#allocation17 + $0x58] sm:$0xff]
          %v757 = vld [vmem:[#allocation17 + $0x60] sm:$0xff]
          %v758 = vld [vmem:[#allocation17 + $0x68] sm:$0xff]
          %v759 = vld [vmem:[#allocation17 + $0x70] sm:$0xff]
          %v760 = vld [vmem:[#allocation17 + $0x78] sm:$0xff]
          %v761 = vld [vmem:[%s7] sm:$0x1]
          %v763 = vperm.slane %v761, 0
          %765 = vmatpush.msra.mxu0 %v760
          %766 = vmatpush.msra.mxu0 %v759
          %767 = vmatpush.msra.mxu0 %v758
          %768 = vmatpush.msra.mxu0 %v757
          %769 = vmatpush.msra.mxu0 %v756
          %770 = vmatpush.msra.mxu0 %v755
          %771 = vmatpush.msra.mxu0 %v754
          %772 = vmatpush.msra.mxu0 %v753
          %773 = vmatpush.msra.mxu0 %v752
          %774 = vmatpush.msra.mxu0 %v751
          %775 = vmatpush.msra.mxu0 %v750
          %776 = vmatpush.msra.mxu0 %v749
          %777 = vmatpush.msra.mxu0 %v748
          %778 = vmatpush.msra.mxu0 %v747
          %779 = vmatpush.msra.mxu0 %v746
          %780 = vmatpush.msra.mxu0 %v745
          %781 = vmatmul.f32.gmra.mxu0 %v744
          %v782 = vpop.f32.mrf.mxu0
          %v783 = vadd.f32 %v763, %v782
          %784 = vdwg.mxu0
          %v785 = vmax.f32 %v783, 0.0
          %p786 = scmp.eq.s32.totalorder %s41, 0
          // Predicated region
          $region113: #{tpu_custom_call.1} parent=111 // pred_check
            %p787 = pneg %p786
          $region114: #{tpu_custom_call.1} parent=111 // pred_check_branch
            %789 = sbr.rel (%p787) target = $region116
          $region115: #{tpu_custom_call.1} parent=111 // pred_region
            %790 = vst [vmem:[#allocation6] sm:$0x1] 0.0
            %791 = vst [vmem:[#allocation7] sm:$0x1] 0.0
          $region116: #{tpu_custom_call.1} parent=111 // pred_fallthru
            _
          %v792 = vmul.f32 %v785, %v632
          %v793 = vld [vmem:[#allocation6] sm:$0x1]
          %v794 = vrot.slane %v792, 4
          %v795 = vadd.f32 %v792, %v794
          %v796 = vrot.slane %v795, 2
          %v797 = vadd.f32 %v795, %v796
          %v798 = vrot.slane %v797, 1
          %v799 = vadd.f32 %v797, %v798
          %v800 = vadd.f32 %v793, %v799
          %801 = vst [vmem:[#allocation6] sm:$0x1] %v800
          %v802 = vld [vmem:[#allocation7] sm:$0x1]
          %v803 = vmul.f32 %v792, %v792
          %v804 = vrot.slane %v803, 4
          %v805 = vadd.f32 %v803, %v804
          %v806 = vrot.slane %v805, 2
          %v807 = vadd.f32 %v805, %v806
          %v808 = vrot.slane %v807, 1
          %v809 = vadd.f32 %v807, %v808
          %v810 = vadd.f32 %v802, %v809
          %811 = vst [vmem:[#allocation7] sm:$0x1] %v810
          %812 = vst [vmem:[%s711] sm:$0xff] %v785
        $region112: #{tpu_custom_call.1} parent=79 // pred_fallthru
          _
        %p813 = scmp.eq.s32.totalorder %s40, 2
        // Predicated region
        $region117: #{tpu_custom_call.1} parent=79 // pred_check
          %p814 = pneg %p813
        $region118: #{tpu_custom_call.1} parent=79 // pred_check_branch
          %816 = sbr.rel (%p814) target = $region120
        $region119: #{tpu_custom_call.1} parent=79 // pred_region
          %s817 = scalar_lea.vmem [#allocation2], %s626
          %v818 = vld [vmem:[%s817] sm:$0xff]
          %v819 = vld [vmem:[#allocation6] sm:$0x1]
          %v820 = vstv %s623
          %v821 = vmul.f32 %v819, %v820
          %v822 = vld [vmem:[#allocation7] sm:$0x1]
          %v823 = vmul.f32 %v822, %v820
          %v824 = vmul.f32 %v821, %v821
          %v825 = vsub.f32 %v823, %v824
          %v826 = vmax.f32 %v825, 0.0
          %v827 = vld [vmem:[%s8] sm:$0x1]
          %v828 = vadd.f32 %v826, 1e-05
          %v829 = vrsqrt.pop %v828
          %v830 = vmul.f32 %v829, %v828
          %v831 = vmul.f32 %v830, %v829
          %v832 = vmul.f32 0.5, %v831
          %v833 = vsub.f32 1.5, %v832
          %v834 = vmul.f32 %v829, %v833
          %vm835 = vweird.f32 %v828
          %vm836 = vweird.f32 %v829
          %vm837 = vmor %vm835, %vm836
          %v838 = vsel %vm837, %v829, %v834
          %v839 = vmul.f32 %v827, %v838
          %v840 = vld [vmem:[%s9] sm:$0x1]
          %v841 = vmul.f32 %v821, %v839
          %v842 = vsub.f32 %v840, %v841
          %v844 = vperm.slane %v839, 0
          %v846 = vmul.f32 %v818, %v844
          %v848 = vperm.slane %v842, 0
          %v850 = vadd.f32 %v846, %v848
          %v851 = vld [vmem:[#allocation18] sm:$0xff]
          %v852 = vld [vmem:[#allocation18 + $0x8] sm:$0xff]
          %v853 = vld [vmem:[#allocation18 + $0x10] sm:$0xff]
          %v854 = vld [vmem:[#allocation18 + $0x18] sm:$0xff]
          %v855 = vld [vmem:[#allocation18 + $0x20] sm:$0xff]
          %v856 = vld [vmem:[#allocation18 + $0x28] sm:$0xff]
          %v857 = vld [vmem:[#allocation18 + $0x30] sm:$0xff]
          %v858 = vld [vmem:[#allocation18 + $0x38] sm:$0xff]
          %v859 = vld [vmem:[#allocation18 + $0x40] sm:$0xff]
          %v860 = vld [vmem:[#allocation18 + $0x48] sm:$0xff]
          %v861 = vld [vmem:[#allocation18 + $0x50] sm:$0xff]
          %v862 = vld [vmem:[#allocation18 + $0x58] sm:$0xff]
          %v863 = vld [vmem:[#allocation18 + $0x60] sm:$0xff]
          %v864 = vld [vmem:[#allocation18 + $0x68] sm:$0xff]
          %v865 = vld [vmem:[#allocation18 + $0x70] sm:$0xff]
          %v866 = vld [vmem:[#allocation18 + $0x78] sm:$0xff]
          %v867 = vld [vmem:[%s11] sm:$0x1]
          %v869 = vperm.slane %v867, 0
          %871 = vmatpush.msra.mxu0 %v866
          %872 = vmatpush.msra.mxu0 %v865
          %873 = vmatpush.msra.mxu0 %v864
          %874 = vmatpush.msra.mxu0 %v863
          %875 = vmatpush.msra.mxu0 %v862
          %876 = vmatpush.msra.mxu0 %v861
          %877 = vmatpush.msra.mxu0 %v860
          %878 = vmatpush.msra.mxu0 %v859
          %879 = vmatpush.msra.mxu0 %v858
          %880 = vmatpush.msra.mxu0 %v857
          %881 = vmatpush.msra.mxu0 %v856
          %882 = vmatpush.msra.mxu0 %v855
          %883 = vmatpush.msra.mxu0 %v854
          %884 = vmatpush.msra.mxu0 %v853
          %885 = vmatpush.msra.mxu0 %v852
          %886 = vmatpush.msra.mxu0 %v851
          %887 = vmatmul.f32.gmra.mxu0 %v850
          %v888 = vpop.f32.mrf.mxu0
          %v889 = vadd.f32 %v869, %v888
          %890 = vdwg.mxu0
          %v891 = vmax.f32 %v889, 0.0
          %p892 = scmp.eq.s32.totalorder %s41, 0
          // Predicated region
          $region121: #{tpu_custom_call.1} parent=119 // pred_check
            %p893 = pneg %p892
          $region122: #{tpu_custom_call.1} parent=119 // pred_check_branch
            %895 = sbr.rel (%p893) target = $region124
          $region123: #{tpu_custom_call.1} parent=119 // pred_region
            %896 = vst [vmem:[#allocation8] sm:$0x1] 0.0
            %897 = vst [vmem:[#allocation9] sm:$0x1] 0.0
          $region124: #{tpu_custom_call.1} parent=119 // pred_fallthru
            _
          %v898 = vmul.f32 %v891, %v632
          %v899 = vld [vmem:[#allocation8] sm:$0x1]
          %v900 = vrot.slane %v898, 4
          %v901 = vadd.f32 %v898, %v900
          %v902 = vrot.slane %v901, 2
          %v903 = vadd.f32 %v901, %v902
          %v904 = vrot.slane %v903, 1
          %v905 = vadd.f32 %v903, %v904
          %v906 = vadd.f32 %v899, %v905
          %907 = vst [vmem:[#allocation8] sm:$0x1] %v906
          %v908 = vld [vmem:[#allocation9] sm:$0x1]
          %v909 = vmul.f32 %v898, %v898
          %v910 = vrot.slane %v909, 4
          %v911 = vadd.f32 %v909, %v910
          %v912 = vrot.slane %v911, 2
          %v913 = vadd.f32 %v911, %v912
          %v914 = vrot.slane %v913, 1
          %v915 = vadd.f32 %v913, %v914
          %v916 = vadd.f32 %v908, %v915
          %917 = vst [vmem:[#allocation9] sm:$0x1] %v916
          %s918 = scalar_lea.vmem [#allocation3], %s626
          %919 = vst [vmem:[%s918] sm:$0xff] %v891
        $region120: #{tpu_custom_call.1} parent=79 // pred_fallthru
          _
        %p920 = scmp.eq.s32.totalorder %s40, 3
        // Predicated region
        $region125: #{tpu_custom_call.1} parent=79 // pred_check
          %p921 = pneg %p920
        $region126: #{tpu_custom_call.1} parent=79 // pred_check_branch
          %923 = sbr.rel (%p921) target = $region128
        $region127: #{tpu_custom_call.1} parent=79 // pred_region
          %s924 = scalar_lea.vmem [#allocation3], %s626
          %v925 = vld [vmem:[%s924] sm:$0xff]
          %v926 = vld [vmem:[#allocation8] sm:$0x1]
          %v927 = vstv %s623
          %v928 = vmul.f32 %v926, %v927
          %v929 = vld [vmem:[#allocation9] sm:$0x1]
          %v930 = vmul.f32 %v929, %v927
          %v931 = vmul.f32 %v928, %v928
          %v932 = vsub.f32 %v930, %v931
          %v933 = vmax.f32 %v932, 0.0
          %v934 = vld [vmem:[%s12] sm:$0x1]
          %v935 = vadd.f32 %v933, 1e-05
          %v936 = vrsqrt.pop %v935
          %v937 = vmul.f32 %v936, %v935
          %v938 = vmul.f32 %v937, %v936
          %v939 = vmul.f32 0.5, %v938
          %v940 = vsub.f32 1.5, %v939
          %v941 = vmul.f32 %v936, %v940
          %vm942 = vweird.f32 %v935
          %vm943 = vweird.f32 %v936
          %vm944 = vmor %vm942, %vm943
          %v945 = vsel %vm944, %v936, %v941
          %v946 = vmul.f32 %v934, %v945
          %v947 = vld [vmem:[%s13] sm:$0x1]
          %v948 = vmul.f32 %v928, %v946
          %v949 = vsub.f32 %v947, %v948
          %v951 = vperm.slane %v946, 0
          %v953 = vmul.f32 %v925, %v951
          %v955 = vperm.slane %v949, 0
          %v957 = vadd.f32 %v953, %v955
          %v958 = vld [vmem:[#allocation20] sm:$0xff]
          %v959 = vld [vmem:[#allocation20 + $0x8] sm:$0xff]
          %v960 = vld [vmem:[#allocation20 + $0x10] sm:$0xff]
          %v961 = vld [vmem:[#allocation20 + $0x18] sm:$0xff]
          %v962 = vld [vmem:[#allocation20 + $0x20] sm:$0xff]
          %v963 = vld [vmem:[#allocation20 + $0x28] sm:$0xff]
          %v964 = vld [vmem:[#allocation20 + $0x30] sm:$0xff]
          %v965 = vld [vmem:[#allocation20 + $0x38] sm:$0xff]
          %v966 = vld [vmem:[#allocation20 + $0x40] sm:$0xff]
          %v967 = vld [vmem:[#allocation20 + $0x48] sm:$0xff]
          %v968 = vld [vmem:[#allocation20 + $0x50] sm:$0xff]
          %v969 = vld [vmem:[#allocation20 + $0x58] sm:$0xff]
          %v970 = vld [vmem:[#allocation20 + $0x60] sm:$0xff]
          %v971 = vld [vmem:[#allocation20 + $0x68] sm:$0xff]
          %v972 = vld [vmem:[#allocation20 + $0x70] sm:$0xff]
          %v973 = vld [vmem:[#allocation20 + $0x78] sm:$0xff]
          %v974 = vld [vmem:[%s15] sm:$0x1]
          %v976 = vperm.slane %v974, 0
          %978 = vmatpush.msra.mxu0 %v973
          %979 = vmatpush.msra.mxu0 %v972
          %980 = vmatpush.msra.mxu0 %v971
          %981 = vmatpush.msra.mxu0 %v970
          %982 = vmatpush.msra.mxu0 %v969
          %983 = vmatpush.msra.mxu0 %v968
          %984 = vmatpush.msra.mxu0 %v967
          %985 = vmatpush.msra.mxu0 %v966
          %986 = vmatpush.msra.mxu0 %v965
          %987 = vmatpush.msra.mxu0 %v964
          %988 = vmatpush.msra.mxu0 %v963
          %989 = vmatpush.msra.mxu0 %v962
          %990 = vmatpush.msra.mxu0 %v961
          %991 = vmatpush.msra.mxu0 %v960
          %992 = vmatpush.msra.mxu0 %v959
          %993 = vmatpush.msra.mxu0 %v958
          %994 = vmatmul.f32.gmra.mxu0 %v957
          %v995 = vpop.f32.mrf.mxu0
          %v996 = vadd.f32 %v976, %v995
          %997 = vdwg.mxu0
          %998 = vst [vmem:[%s601] sm:$0xff] %v996
        $region128: #{tpu_custom_call.1} parent=79 // pred_fallthru
          _
        %s999 = sand.u32 %s384, 1
        %s1000 = scalar_lea.sflag [#allocation14], %s999
        %s1001 = sand.u32 %s384, 1
        %s1002 = smul.addr %s1001, 8
        %s1003 = scalar_lea.vmem [#allocation21], %s1002
        // Predicated region
        $region129: #{tpu_custom_call.1} parent=79 // pred_check
          %p1004 = pneg %p394
        $region130: #{tpu_custom_call.1} parent=79 // pred_check_branch
          %1006 = sbr.rel (%p1004) target = $region132
        $region131: #{tpu_custom_call.1} parent=79 // pred_region
          %p1007 = scmp.eq.s32.totalorder %s40, 3
          %s1008 = scalar_select %p1007, %s41, 0
          %1010 = vsyncadd %s1000, 0
          %s1011 = smul.addr %s1008, 8
          %s1012 = scalar_lea.hbm %s16, %s1011
          %s1014 = sshll.u32 %s1003, 4
          %s1015 = int_to_ptr.vmem [resolvable:$true] %s1014
          %s1016 = sshll.u32 %s1012, 4
          %s1017 = int_to_ptr.hbm [resolvable:$true] %s1016
          %1019 = dma.vmem_to_hbm [thread:$0]  %s1015, 128, %s1017, %s1000
        $region132: #{tpu_custom_call.1} parent=79 // pred_fallthru
          _
      $region80: #{tpu_custom_call.1} parent=5 // pred_fallthru
        _
      %p1020 = scmp.le.s32.totalorder 2, %s31
      // Predicated region
      $region133: #{tpu_custom_call.1} parent=5 // pred_check
        %p1021 = pneg %p1020
      $region134: #{tpu_custom_call.1} parent=5 // pred_check_branch
        %1023 = sbr.rel (%p1021) target = $region136
      $region135: #{tpu_custom_call.1} parent=5 // pred_region
        %s1024 = ssub.s32 %s31, 2
        // Predicated region
        $region137: #{tpu_custom_call.1} parent=135 // pred_check
          %p1025 = pneg %p400
        $region138: #{tpu_custom_call.1} parent=135 // pred_check_branch
          %1027 = sbr.rel (%p1025) target = $region140
        $region139: #{tpu_custom_call.1} parent=135 // pred_region
          %s1028 = sand.u32 %s385, 1
          %s1029 = scalar_lea.sflag [#allocation14], %s1028
          %s1030 = sand.u32 %s385, 1
          %s1031 = smul.addr %s1030, 8
          %s1032 = scalar_lea.vmem [#allocation21], %s1031
          %1034 = dma.done %s1029, 128
        $region140: #{tpu_custom_call.1} parent=135 // pred_fallthru
          _
      $region136: #{tpu_custom_call.1} parent=5 // pred_fallthru
        _
    $region6: #{tpu_custom_call.1} parent=1 // loop_footer
      %s35 = sadd.s32 1, %s31
    $region7: #{tpu_custom_call.1} parent=1 // loop_footer_branch
      %30 = sbr.rel target = $region3
    $region8: #{tpu_custom_call.1} parent=1 // loop_exit
      _
    %1035 = vsyncpa [#allocation13], 1
    %s1036 = scalar_lea.sflag [#allocation13], 1
    %1037 = vsyncpa %s1036, 1
    %1038 = vsyncpa [#allocation16], 1
    %1039 = vsyncpa [#allocation19], 1
    %1040 = vsyncpa [#allocation14], 1
    %s1041 = scalar_lea.sflag [#allocation14], 1
    %1042 = vsyncpa %s1041, 1

</llo_original>
